<compile_context>
chip_gen: v7x
topology: tpu7x:2x2x1
jax: 0.10.0
libtpu: 0.0.40
codegen_flags: <defaults>
</compile_context>

<pallas_src>
from functools import partial

import jax
import jax.numpy as jnp
from jax import lax
from jax.experimental import pallas as pl
from jax.experimental.pallas import tpu as pltpu


def _layernorm_f32(x, g, b, eps=1e-5):
    # Matches torch LayerNorm (biased variance), computed in fp32.
    x32 = x.astype(jnp.float32)
    mu = jnp.mean(x32, axis=-1, keepdims=True)
    var = jnp.mean((x32 - mu) ** 2, axis=-1, keepdims=True)
    return (x32 - mu) * lax.rsqrt(var + eps) * g + b


def block_kernel(n_head, cdt,
                 x_ref,
                 ln1_g_ref, ln1_b_ref,
                 wqkv_t_ref, bqkv_ref,
                 wo_t_ref, bo_ref,
                 ln2_g_ref, ln2_b_ref,
                 wfc_t_ref, bfc_ref,
                 wproj_t_ref, bproj_ref,
                 o_ref,
                 ctx_scratch):
    x = x_ref[...].astype(jnp.float32)          # (S, D) -- one batch element
    S, D = x.shape
    H = n_head
    Dh = D // H

    # ---------------- attention branch: x + attn(ln_1(x)) ----------------
    y = _layernorm_f32(x, ln1_g_ref[0], ln1_b_ref[0]).astype(cdt)         # (S, D)
    qkv = jnp.dot(y, wqkv_t_ref[...],
                  preferred_element_type=jnp.float32) + bqkv_ref[0]       # (S, 3D) f32

    scale = 1.0 / (Dh ** 0.5)
    q = (qkv[:, :D] * scale).astype(cdt)       # pre-scale q (matches torch MHA)
    k = qkv[:, D:2 * D].astype(cdt)
    v = qkv[:, 2 * D:].astype(cdt)

    # Per-head attention: clean (S,Dh)@(Dh,S) / (S,S)@(S,Dh) MXU calls, no
    # (H,S,S) live tensor and no head-axis relayout.
    for h in range(H):
        lo, hi = h * Dh, (h + 1) * Dh
        qh = q[:, lo:hi]                                                   # (S, Dh)
        kh = k[:, lo:hi]
        vh = v[:, lo:hi]
        s_h = lax.dot_general(qh, kh, (((1,), (1,)), ((), ())),
                              preferred_element_type=jnp.float32)          # (S, S)
        # TODO(synk): attn_mask is None for this block; it would be added here.
        s_h = s_h - jnp.max(s_h, axis=-1, keepdims=True)
        p = jnp.exp(s_h)
        p = p * pl.reciprocal(jnp.sum(p, axis=-1, keepdims=True), approx=True)
        ctx_scratch[:, lo:hi] = jnp.dot(p.astype(cdt), vh,
                                        preferred_element_type=jnp.float32)

    ctx = ctx_scratch[...].astype(cdt)                                     # (S, D)
    attn_out = jnp.dot(ctx, wo_t_ref[...],
                       preferred_element_type=jnp.float32) + bo_ref[0]
    x = x + attn_out

    # ---------------- MLP branch: x + mlp(ln_2(x)) ----------------
    y2 = _layernorm_f32(x, ln2_g_ref[0], ln2_b_ref[0]).astype(cdt)
    hid = jnp.dot(y2, wfc_t_ref[...],
                  preferred_element_type=jnp.float32) + bfc_ref[0]         # (S, 4D) f32
    hid = hid * jax.nn.sigmoid(1.702 * hid)    # QuickGELU in f32
    # TODO(synk): nn.Dropout(0.3) treated as eval-mode identity (no RNG drop).
    m = jnp.dot(hid.astype(cdt), wproj_t_ref[...],
                preferred_element_type=jnp.float32) + bproj_ref[0]         # (S, D)
    x = x + m

    o_ref[...] = x.astype(o_ref.dtype)


def residual_attention_block(x, params, n_head, compute_dtype=jnp.bfloat16):
    """x: (B, S, D) float32 -> (B, S, D) float32."""
    B, S, D = x.shape
    assert D % n_head == 0, "d_model must be divisible by n_head"
    cdt = compute_dtype

    def r2(v):  # 1-D params -> (1, N) so blocks satisfy TPU layout rules (kept f32)
        return v.reshape(1, -1).astype(jnp.float32)

    # One-time wrapper-side transposes: weights become contraction-major so the
    # kernel feeds the MXU directly (no in-kernel .T / relayout).  Cast to the
    # compute dtype (halves weight DMA bytes, full-rate bf16 MXU).
    wqkv_t = params['wqkv'].T.astype(cdt)     # (D, 3D)
    wo_t = params['wo'].T.astype(cdt)         # (D, D)
    wfc_t = params['wfc'].T.astype(cdt)       # (D, 4D)
    wproj_t = params['wproj'].T.astype(cdt)   # (4D, D)

    args = (x,
            r2(params['ln1_g']), r2(params['ln1_b']),
            wqkv_t, r2(params['bqkv']),
            wo_t, r2(params['bo']),
            r2(params['ln2_g']), r2(params['ln2_b']),
            wfc_t, r2(params['bfc']),
            wproj_t, r2(params['bproj']))

    def full_spec(a):
        nd = a.ndim
        return pl.BlockSpec(a.shape, lambda b, _nd=nd: (0,) * _nd)

    in_specs = [pl.BlockSpec((pl.Squeezed(), S, D), lambda b: (b, 0, 0))] + \
               [full_spec(a) for a in args[1:]]

    return pl.pallas_call(
        partial(block_kernel, n_head, cdt),
        out_shape=jax.ShapeDtypeStruct((B, S, D), x.dtype),
        grid=(B,),
        in_specs=in_specs,
        out_specs=pl.BlockSpec((pl.Squeezed(), S, D), lambda b: (b, 0, 0)),
        scratch_shapes=[pltpu.VMEM((S, D), jnp.float32)],
        compiler_params=pltpu.CompilerParams(
            dimension_semantics=("parallel",),
            vmem_limit_bytes=64 * 1024 * 1024),
    )(*args)


# ---------------- pure-JAX reference (for verification) ----------------
def reference_block(x, params, n_head):
    B, S, D = x.shape
    H = n_head
    Dh = D // H

    def ln(z, g, b, eps=1e-5):
        mu = jnp.mean(z, axis=-1, keepdims=True)
        var = jnp.mean((z - mu) ** 2, axis=-1, keepdims=True)
        return (z - mu) / jnp.sqrt(var + eps) * g + b

    y = ln(x, params['ln1_g'], params['ln1_b'])
    qkv = y @ params['wqkv'].T + params['bqkv']
    q, k, v = jnp.split(qkv, 3, axis=-1)
    qh = q.reshape(B, S, H, Dh)
    kh = k.reshape(B, S, H, Dh)
    vh = v.reshape(B, S, H, Dh)
    scores = jnp.einsum('bqhd,bkhd->bhqk', qh, kh) / (Dh ** 0.5)
    p = jax.nn.softmax(scores, axis=-1)
    ctx = jnp.einsum('bhqk,bkhd->bqhd', p, vh).reshape(B, S, D)
    attn_out = ctx @ params['wo'].T + params['bo']
    x = x + attn_out

    y2 = ln(x, params['ln2_g'], params['ln2_b'])
    h = y2 @ params['wfc'].T + params['bfc']
    h = h * jax.nn.sigmoid(1.702 * h)
    m = h @ params['wproj'].T + params['bproj']
    return x + m


if __name__ == "__main__":
    B, S, D, H = 2, 8, 32, 4

    key = jax.random.PRNGKey(0)
    ks = jax.random.split(key, 8)

    def init(k, shape, scale=0.05):
        return (scale * jax.random.normal(k, shape)).astype(jnp.float32)

    params = {
        'ln1_g': jnp.ones((D,), jnp.float32),
        'ln1_b': jnp.zeros((D,), jnp.float32),
        'wqkv':  init(ks[0], (3 * D, D)),          # torch in_proj_weight
        'bqkv':  init(ks[1], (3 * D,)),
        'wo':    init(ks[2], (D, D)),              # torch out_proj.weight
        'bo':    init(ks[3], (D,)),
        'ln2_g': jnp.ones((D,), jnp.float32),
        'ln2_b': jnp.zeros((D,), jnp.float32),
        'wfc':   init(ks[4], (4 * D, D)),          # mlp.c_fc.weight
        'bfc':   init(ks[5], (4 * D,)),
        'wproj': init(ks[6], (D, 4 * D)),          # mlp.c_proj.weight
        'bproj': init(ks[7], (D,)),
    }

    x = jax.random.normal(jax.random.PRNGKey(42), (B, S, D), jnp.float32)

    out = residual_attention_block(x, params, H)
    out = jax.block_until_ready(out)

    ref = reference_block(x, params, H)
    assert out.shape == (B, S, D)
    # bf16 matmul operands + approx reciprocal -> tolerance looser than pure-f32.
    err = float(jnp.max(jnp.abs(out - ref)))
    assert err < 2e-2, f"max abs err {err}"

    print("KERNEL_OK")
</pallas_src>

<mosaic_0001>
module attributes {stable_mosaic.version = 11 : i64} {
  func.func @block_kernel(%arg0: i32, %arg1: memref<1x8x32xf32, #tpu.memory_space<vmem>>, %arg2: memref<1x32xf32, #tpu.memory_space<vmem>>, %arg3: memref<1x32xf32, #tpu.memory_space<vmem>>, %arg4: memref<32x96xbf16, #tpu.memory_space<vmem>>, %arg5: memref<1x96xf32, #tpu.memory_space<vmem>>, %arg6: memref<32x32xbf16, #tpu.memory_space<vmem>>, %arg7: memref<1x32xf32, #tpu.memory_space<vmem>>, %arg8: memref<1x32xf32, #tpu.memory_space<vmem>>, %arg9: memref<1x32xf32, #tpu.memory_space<vmem>>, %arg10: memref<32x128xbf16, #tpu.memory_space<vmem>>, %arg11: memref<1x128xf32, #tpu.memory_space<vmem>>, %arg12: memref<128x32xbf16, #tpu.memory_space<vmem>>, %arg13: memref<1x32xf32, #tpu.memory_space<vmem>>, %arg14: memref<1x8x32xf32, #tpu.memory_space<vmem>>, %arg15: memref<8x32xf32, #tpu.memory_space<vmem>>) attributes {dimension_semantics = [#tpu.dimension_semantics<parallel>], iteration_bounds = array<i64: 2>, scalar_prefetch = 0 : i64, scratch_operands = 1 : i64, tpu.core_type = #tpu.core_type<tc>, window_params = [{transform_indices = @transform_0, window_bounds = array<i64: 1, 8, 32>}, {pipeline_mode = #tpu.pipeline_mode<synchronous>, transform_indices = @transform_1, window_bounds = array<i64: 1, 32>}, {pipeline_mode = #tpu.pipeline_mode<synchronous>, transform_indices = @transform_2, window_bounds = array<i64: 1, 32>}, {pipeline_mode = #tpu.pipeline_mode<synchronous>, transform_indices = @transform_3, window_bounds = array<i64: 32, 96>}, {pipeline_mode = #tpu.pipeline_mode<synchronous>, transform_indices = @transform_4, window_bounds = array<i64: 1, 96>}, {pipeline_mode = #tpu.pipeline_mode<synchronous>, transform_indices = @transform_5, window_bounds = array<i64: 32, 32>}, {pipeline_mode = #tpu.pipeline_mode<synchronous>, transform_indices = @transform_6, window_bounds = array<i64: 1, 32>}, {pipeline_mode = #tpu.pipeline_mode<synchronous>, transform_indices = @transform_7, window_bounds = array<i64: 1, 32>}, {pipeline_mode = #tpu.pipeline_mode<synchronous>, transform_indices = @transform_8, window_bounds = array<i64: 1, 32>}, {pipeline_mode = #tpu.pipeline_mode<synchronous>, transform_indices = @transform_9, window_bounds = array<i64: 32, 128>}, {pipeline_mode = #tpu.pipeline_mode<synchronous>, transform_indices = @transform_10, window_bounds = array<i64: 1, 128>}, {pipeline_mode = #tpu.pipeline_mode<synchronous>, transform_indices = @transform_11, window_bounds = array<i64: 128, 32>}, {pipeline_mode = #tpu.pipeline_mode<synchronous>, transform_indices = @transform_12, window_bounds = array<i64: 1, 32>}, {transform_indices = @transform_13, window_bounds = array<i64: 1, 8, 32>}]} {
    %c0 = arith.constant 0 : index
    %c0_0 = arith.constant 0 : index
    %c0_1 = arith.constant 0 : index
    %0 = vector.load %arg1[%c0, %c0_0, %c0_1] : memref<1x8x32xf32, #tpu.memory_space<vmem>>, vector<1x8x32xf32>
    %1 = vector.shape_cast %0 : vector<1x8x32xf32> to vector<8x32xf32>
    %c0_2 = arith.constant 0 : index
    %c0_3 = arith.constant 0 : index
    %2 = vector.load %arg2[%c0_2, %c0_3] : memref<1x32xf32, #tpu.memory_space<vmem>>, vector<1x32xf32>
    %3 = vector.shape_cast %2 : vector<1x32xf32> to vector<32xf32>
    %c0_4 = arith.constant 0 : index
    %c0_5 = arith.constant 0 : index
    %4 = vector.load %arg3[%c0_4, %c0_5] : memref<1x32xf32, #tpu.memory_space<vmem>>, vector<1x32xf32>
    %5 = vector.shape_cast %4 : vector<1x32xf32> to vector<32xf32>
    %cst = arith.constant dense<0.000000e+00> : vector<8xf32>
    %6 = vector.multi_reduction <add>, %1, %cst [1] : vector<8x32xf32> to vector<8xf32>
    %7 = vector.shape_cast %6 : vector<8xf32> to vector<8x1xf32>
    %cst_6 = arith.constant 3.200000e+01 : f32
    %8 = vector.broadcast %cst_6 : f32 to vector<8x1xf32>
    %9 = arith.divf %7, %8 : vector<8x1xf32>
    %10 = vector.broadcast %9 : vector<8x1xf32> to vector<8x32xf32>
    %11 = arith.subf %1, %10 : vector<8x32xf32>
    %12 = arith.mulf %11, %11 : vector<8x32xf32>
    %cst_7 = arith.constant dense<0.000000e+00> : vector<8xf32>
    %13 = vector.multi_reduction <add>, %12, %cst_7 [1] : vector<8x32xf32> to vector<8xf32>
    %14 = vector.shape_cast %13 : vector<8xf32> to vector<8x1xf32>
    %cst_8 = arith.constant 3.200000e+01 : f32
    %15 = vector.broadcast %cst_8 : f32 to vector<8x1xf32>
    %16 = arith.divf %14, %15 : vector<8x1xf32>
    %17 = vector.broadcast %9 : vector<8x1xf32> to vector<8x32xf32>
    %18 = arith.subf %1, %17 : vector<8x32xf32>
    %cst_9 = arith.constant 9.99999974E-6 : f32
    %19 = vector.broadcast %cst_9 : f32 to vector<8x1xf32>
    %20 = arith.addf %16, %19 : vector<8x1xf32>
    %21 = math.rsqrt %20 : vector<8x1xf32>
    %22 = vector.broadcast %21 : vector<8x1xf32> to vector<8x32xf32>
    %23 = arith.mulf %18, %22 : vector<8x32xf32>
    %24 = vector.shape_cast %3 : vector<32xf32> to vector<1x32xf32>
    %25 = vector.broadcast %24 : vector<1x32xf32> to vector<8x32xf32>
    %26 = arith.mulf %23, %25 : vector<8x32xf32>
    %27 = vector.shape_cast %5 : vector<32xf32> to vector<1x32xf32>
    %28 = vector.broadcast %27 : vector<1x32xf32> to vector<8x32xf32>
    %29 = arith.addf %26, %28 : vector<8x32xf32>
    %30 = arith.truncf %29 : vector<8x32xf32> to vector<8x32xbf16>
    %c0_10 = arith.constant 0 : index
    %c0_11 = arith.constant 0 : index
    %31 = vector.load %arg4[%c0_10, %c0_11] : memref<32x96xbf16, #tpu.memory_space<vmem>>, vector<32x96xbf16>
    %cst_12 = arith.constant dense<0.000000e+00> : vector<8x96xf32>
    %32 = tpu.matmul %30, %31, %cst_12 {dimension_numbers = #tpu.dot_dimension_numbers<[1], [0], [0], [1], [0, 0, 1, 1], [], []>} : vector<8x32xbf16>, vector<32x96xbf16>, vector<8x96xf32> -> vector<8x96xf32>
    %c0_13 = arith.constant 0 : index
    %c0_14 = arith.constant 0 : index
    %33 = vector.load %arg5[%c0_13, %c0_14] : memref<1x96xf32, #tpu.memory_space<vmem>>, vector<1x96xf32>
    %34 = vector.shape_cast %33 : vector<1x96xf32> to vector<96xf32>
    %35 = vector.shape_cast %34 : vector<96xf32> to vector<1x96xf32>
    %36 = vector.broadcast %35 : vector<1x96xf32> to vector<8x96xf32>
    %37 = arith.addf %32, %36 : vector<8x96xf32>
    %38 = vector.extract_strided_slice %37 {offsets = [0, 0], sizes = [8, 32], strides = [1, 1]} : vector<8x96xf32> to vector<8x32xf32>
    %cst_15 = arith.constant 0.353553385 : f32
    %39 = vector.broadcast %cst_15 : f32 to vector<8x32xf32>
    %40 = arith.mulf %38, %39 : vector<8x32xf32>
    %41 = arith.truncf %40 : vector<8x32xf32> to vector<8x32xbf16>
    %42 = vector.extract_strided_slice %37 {offsets = [0, 32], sizes = [8, 32], strides = [1, 1]} : vector<8x96xf32> to vector<8x32xf32>
    %43 = arith.truncf %42 : vector<8x32xf32> to vector<8x32xbf16>
    %44 = vector.extract_strided_slice %37 {offsets = [0, 64], sizes = [8, 32], strides = [1, 1]} : vector<8x96xf32> to vector<8x32xf32>
    %45 = arith.truncf %44 : vector<8x32xf32> to vector<8x32xbf16>
    %46 = vector.extract_strided_slice %41 {offsets = [0, 0], sizes = [8, 8], strides = [1, 1]} : vector<8x32xbf16> to vector<8x8xbf16>
    %47 = vector.extract_strided_slice %43 {offsets = [0, 0], sizes = [8, 8], strides = [1, 1]} : vector<8x32xbf16> to vector<8x8xbf16>
    %48 = vector.extract_strided_slice %45 {offsets = [0, 0], sizes = [8, 8], strides = [1, 1]} : vector<8x32xbf16> to vector<8x8xbf16>
    %cst_16 = arith.constant dense<0.000000e+00> : vector<8x8xf32>
    %49 = tpu.matmul %46, %47, %cst_16 {dimension_numbers = #tpu.dot_dimension_numbers<[1], [1], [0], [0], [0, 0, 1, 0], [], []>} : vector<8x8xbf16>, vector<8x8xbf16>, vector<8x8xf32> -> vector<8x8xf32>
    %cst_17 = arith.constant dense<0xFF800000> : vector<8xf32>
    %50 = vector.multi_reduction <maximumf>, %49, %cst_17 [1] : vector<8x8xf32> to vector<8xf32>
    %51 = vector.shape_cast %50 : vector<8xf32> to vector<8x1xf32>
    %52 = vector.broadcast %51 : vector<8x1xf32> to vector<8x8xf32>
    %53 = arith.subf %49, %52 : vector<8x8xf32>
    %54 = math.exp %53 : vector<8x8xf32>
    %cst_18 = arith.constant dense<0.000000e+00> : vector<8xf32>
    %55 = vector.multi_reduction <add>, %54, %cst_18 [1] : vector<8x8xf32> to vector<8xf32>
    %56 = vector.shape_cast %55 : vector<8xf32> to vector<8x1xf32>
    %57 = tpu.reciprocal %56 {approx = true} : vector<8x1xf32> -> vector<8x1xf32>
    %58 = vector.broadcast %57 : vector<8x1xf32> to vector<8x8xf32>
    %59 = arith.mulf %54, %58 : vector<8x8xf32>
    %60 = arith.truncf %59 : vector<8x8xf32> to vector<8x8xbf16>
    %cst_19 = arith.constant dense<0.000000e+00> : vector<8x8xf32>
    %61 = tpu.matmul %60, %48, %cst_19 {dimension_numbers = #tpu.dot_dimension_numbers<[1], [0], [0], [1], [0, 0, 1, 1], [], []>} : vector<8x8xbf16>, vector<8x8xbf16>, vector<8x8xf32> -> vector<8x8xf32>
    %c0_20 = arith.constant 0 : index
    %c0_21 = arith.constant 0 : index
    %62 = vector.load %arg15[%c0_20, %c0_21] : memref<8x32xf32, #tpu.memory_space<vmem>>, vector<8x8xf32>
    tpu.vector_store %arg15[%c0_20, %c0_21], %61 {strides = array<i32>} : memref<8x32xf32, #tpu.memory_space<vmem>>, vector<8x8xf32>,
    %63 = vector.extract_strided_slice %41 {offsets = [0, 8], sizes = [8, 8], strides = [1, 1]} : vector<8x32xbf16> to vector<8x8xbf16>
    %64 = vector.extract_strided_slice %43 {offsets = [0, 8], sizes = [8, 8], strides = [1, 1]} : vector<8x32xbf16> to vector<8x8xbf16>
    %65 = vector.extract_strided_slice %45 {offsets = [0, 8], sizes = [8, 8], strides = [1, 1]} : vector<8x32xbf16> to vector<8x8xbf16>
    %cst_22 = arith.constant dense<0.000000e+00> : vector<8x8xf32>
    %66 = tpu.matmul %63, %64, %cst_22 {dimension_numbers = #tpu.dot_dimension_numbers<[1], [1], [0], [0], [0, 0, 1, 0], [], []>} : vector<8x8xbf16>, vector<8x8xbf16>, vector<8x8xf32> -> vector<8x8xf32>
    %cst_23 = arith.constant dense<0xFF800000> : vector<8xf32>
    %67 = vector.multi_reduction <maximumf>, %66, %cst_23 [1] : vector<8x8xf32> to vector<8xf32>
    %68 = vector.shape_cast %67 : vector<8xf32> to vector<8x1xf32>
    %69 = vector.broadcast %68 : vector<8x1xf32> to vector<8x8xf32>
    %70 = arith.subf %66, %69 : vector<8x8xf32>
    %71 = math.exp %70 : vector<8x8xf32>
    %cst_24 = arith.constant dense<0.000000e+00> : vector<8xf32>
    %72 = vector.multi_reduction <add>, %71, %cst_24 [1] : vector<8x8xf32> to vector<8xf32>
    %73 = vector.shape_cast %72 : vector<8xf32> to vector<8x1xf32>
    %74 = tpu.reciprocal %73 {approx = true} : vector<8x1xf32> -> vector<8x1xf32>
    %75 = vector.broadcast %74 : vector<8x1xf32> to vector<8x8xf32>
    %76 = arith.mulf %71, %75 : vector<8x8xf32>
    %77 = arith.truncf %76 : vector<8x8xf32> to vector<8x8xbf16>
    %cst_25 = arith.constant dense<0.000000e+00> : vector<8x8xf32>
    %78 = tpu.matmul %77, %65, %cst_25 {dimension_numbers = #tpu.dot_dimension_numbers<[1], [0], [0], [1], [0, 0, 1, 1], [], []>} : vector<8x8xbf16>, vector<8x8xbf16>, vector<8x8xf32> -> vector<8x8xf32>
    %c0_26 = arith.constant 0 : index
    %c8 = arith.constant 8 : index
    %79 = vector.load %arg15[%c0_26, %c8] : memref<8x32xf32, #tpu.memory_space<vmem>>, vector<8x8xf32>
    tpu.vector_store %arg15[%c0_26, %c8], %78 {strides = array<i32>} : memref<8x32xf32, #tpu.memory_space<vmem>>, vector<8x8xf32>,
    %80 = vector.extract_strided_slice %41 {offsets = [0, 16], sizes = [8, 8], strides = [1, 1]} : vector<8x32xbf16> to vector<8x8xbf16>
    %81 = vector.extract_strided_slice %43 {offsets = [0, 16], sizes = [8, 8], strides = [1, 1]} : vector<8x32xbf16> to vector<8x8xbf16>
    %82 = vector.extract_strided_slice %45 {offsets = [0, 16], sizes = [8, 8], strides = [1, 1]} : vector<8x32xbf16> to vector<8x8xbf16>
    %cst_27 = arith.constant dense<0.000000e+00> : vector<8x8xf32>
    %83 = tpu.matmul %80, %81, %cst_27 {dimension_numbers = #tpu.dot_dimension_numbers<[1], [1], [0], [0], [0, 0, 1, 0], [], []>} : vector<8x8xbf16>, vector<8x8xbf16>, vector<8x8xf32> -> vector<8x8xf32>
    %cst_28 = arith.constant dense<0xFF800000> : vector<8xf32>
    %84 = vector.multi_reduction <maximumf>, %83, %cst_28 [1] : vector<8x8xf32> to vector<8xf32>
    %85 = vector.shape_cast %84 : vector<8xf32> to vector<8x1xf32>
    %86 = vector.broadcast %85 : vector<8x1xf32> to vector<8x8xf32>
    %87 = arith.subf %83, %86 : vector<8x8xf32>
    %88 = math.exp %87 : vector<8x8xf32>
    %cst_29 = arith.constant dense<0.000000e+00> : vector<8xf32>
    %89 = vector.multi_reduction <add>, %88, %cst_29 [1] : vector<8x8xf32> to vector<8xf32>
    %90 = vector.shape_cast %89 : vector<8xf32> to vector<8x1xf32>
    %91 = tpu.reciprocal %90 {approx = true} : vector<8x1xf32> -> vector<8x1xf32>
    %92 = vector.broadcast %91 : vector<8x1xf32> to vector<8x8xf32>
    %93 = arith.mulf %88, %92 : vector<8x8xf32>
    %94 = arith.truncf %93 : vector<8x8xf32> to vector<8x8xbf16>
    %cst_30 = arith.constant dense<0.000000e+00> : vector<8x8xf32>
    %95 = tpu.matmul %94, %82, %cst_30 {dimension_numbers = #tpu.dot_dimension_numbers<[1], [0], [0], [1], [0, 0, 1, 1], [], []>} : vector<8x8xbf16>, vector<8x8xbf16>, vector<8x8xf32> -> vector<8x8xf32>
    %c0_31 = arith.constant 0 : index
    %c16 = arith.constant 16 : index
    %96 = vector.load %arg15[%c0_31, %c16] : memref<8x32xf32, #tpu.memory_space<vmem>>, vector<8x8xf32>
    tpu.vector_store %arg15[%c0_31, %c16], %95 {strides = array<i32>} : memref<8x32xf32, #tpu.memory_space<vmem>>, vector<8x8xf32>,
    %97 = vector.extract_strided_slice %41 {offsets = [0, 24], sizes = [8, 8], strides = [1, 1]} : vector<8x32xbf16> to vector<8x8xbf16>
    %98 = vector.extract_strided_slice %43 {offsets = [0, 24], sizes = [8, 8], strides = [1, 1]} : vector<8x32xbf16> to vector<8x8xbf16>
    %99 = vector.extract_strided_slice %45 {offsets = [0, 24], sizes = [8, 8], strides = [1, 1]} : vector<8x32xbf16> to vector<8x8xbf16>
    %cst_32 = arith.constant dense<0.000000e+00> : vector<8x8xf32>
    %100 = tpu.matmul %97, %98, %cst_32 {dimension_numbers = #tpu.dot_dimension_numbers<[1], [1], [0], [0], [0, 0, 1, 0], [], []>} : vector<8x8xbf16>, vector<8x8xbf16>, vector<8x8xf32> -> vector<8x8xf32>
    %cst_33 = arith.constant dense<0xFF800000> : vector<8xf32>
    %101 = vector.multi_reduction <maximumf>, %100, %cst_33 [1] : vector<8x8xf32> to vector<8xf32>
    %102 = vector.shape_cast %101 : vector<8xf32> to vector<8x1xf32>
    %103 = vector.broadcast %102 : vector<8x1xf32> to vector<8x8xf32>
    %104 = arith.subf %100, %103 : vector<8x8xf32>
    %105 = math.exp %104 : vector<8x8xf32>
    %cst_34 = arith.constant dense<0.000000e+00> : vector<8xf32>
    %106 = vector.multi_reduction <add>, %105, %cst_34 [1] : vector<8x8xf32> to vector<8xf32>
    %107 = vector.shape_cast %106 : vector<8xf32> to vector<8x1xf32>
    %108 = tpu.reciprocal %107 {approx = true} : vector<8x1xf32> -> vector<8x1xf32>
    %109 = vector.broadcast %108 : vector<8x1xf32> to vector<8x8xf32>
    %110 = arith.mulf %105, %109 : vector<8x8xf32>
    %111 = arith.truncf %110 : vector<8x8xf32> to vector<8x8xbf16>
    %cst_35 = arith.constant dense<0.000000e+00> : vector<8x8xf32>
    %112 = tpu.matmul %111, %99, %cst_35 {dimension_numbers = #tpu.dot_dimension_numbers<[1], [0], [0], [1], [0, 0, 1, 1], [], []>} : vector<8x8xbf16>, vector<8x8xbf16>, vector<8x8xf32> -> vector<8x8xf32>
    %c0_36 = arith.constant 0 : index
    %c24 = arith.constant 24 : index
    %113 = vector.load %arg15[%c0_36, %c24] : memref<8x32xf32, #tpu.memory_space<vmem>>, vector<8x8xf32>
    tpu.vector_store %arg15[%c0_36, %c24], %112 {strides = array<i32>} : memref<8x32xf32, #tpu.memory_space<vmem>>, vector<8x8xf32>,
    %c0_37 = arith.constant 0 : index
    %c0_38 = arith.constant 0 : index
    %114 = vector.load %arg15[%c0_37, %c0_38] : memref<8x32xf32, #tpu.memory_space<vmem>>, vector<8x32xf32>
    %115 = arith.truncf %114 : vector<8x32xf32> to vector<8x32xbf16>
    %c0_39 = arith.constant 0 : index
    %c0_40 = arith.constant 0 : index
    %116 = vector.load %arg6[%c0_39, %c0_40] : memref<32x32xbf16, #tpu.memory_space<vmem>>, vector<32x32xbf16>
    %cst_41 = arith.constant dense<0.000000e+00> : vector<8x32xf32>
    %117 = tpu.matmul %115, %116, %cst_41 {dimension_numbers = #tpu.dot_dimension_numbers<[1], [0], [0], [1], [0, 0, 1, 1], [], []>} : vector<8x32xbf16>, vector<32x32xbf16>, vector<8x32xf32> -> vector<8x32xf32>
    %c0_42 = arith.constant 0 : index
    %c0_43 = arith.constant 0 : index
    %118 = vector.load %arg7[%c0_42, %c0_43] : memref<1x32xf32, #tpu.memory_space<vmem>>, vector<1x32xf32>
    %119 = vector.shape_cast %118 : vector<1x32xf32> to vector<32xf32>
    %120 = vector.shape_cast %119 : vector<32xf32> to vector<1x32xf32>
    %121 = vector.broadcast %120 : vector<1x32xf32> to vector<8x32xf32>
    %122 = arith.addf %117, %121 : vector<8x32xf32>
    %123 = arith.addf %1, %122 : vector<8x32xf32>
    %c0_44 = arith.constant 0 : index
    %c0_45 = arith.constant 0 : index
    %124 = vector.load %arg8[%c0_44, %c0_45] : memref<1x32xf32, #tpu.memory_space<vmem>>, vector<1x32xf32>
    %125 = vector.shape_cast %124 : vector<1x32xf32> to vector<32xf32>
    %c0_46 = arith.constant 0 : index
    %c0_47 = arith.constant 0 : index
    %126 = vector.load %arg9[%c0_46, %c0_47] : memref<1x32xf32, #tpu.memory_space<vmem>>, vector<1x32xf32>
    %127 = vector.shape_cast %126 : vector<1x32xf32> to vector<32xf32>
    %cst_48 = arith.constant dense<0.000000e+00> : vector<8xf32>
    %128 = vector.multi_reduction <add>, %123, %cst_48 [1] : vector<8x32xf32> to vector<8xf32>
    %129 = vector.shape_cast %128 : vector<8xf32> to vector<8x1xf32>
    %cst_49 = arith.constant 3.200000e+01 : f32
    %130 = vector.broadcast %cst_49 : f32 to vector<8x1xf32>
    %131 = arith.divf %129, %130 : vector<8x1xf32>
    %132 = vector.broadcast %131 : vector<8x1xf32> to vector<8x32xf32>
    %133 = arith.subf %123, %132 : vector<8x32xf32>
    %134 = arith.mulf %133, %133 : vector<8x32xf32>
    %cst_50 = arith.constant dense<0.000000e+00> : vector<8xf32>
    %135 = vector.multi_reduction <add>, %134, %cst_50 [1] : vector<8x32xf32> to vector<8xf32>
    %136 = vector.shape_cast %135 : vector<8xf32> to vector<8x1xf32>
    %cst_51 = arith.constant 3.200000e+01 : f32
    %137 = vector.broadcast %cst_51 : f32 to vector<8x1xf32>
    %138 = arith.divf %136, %137 : vector<8x1xf32>
    %139 = vector.broadcast %131 : vector<8x1xf32> to vector<8x32xf32>
    %140 = arith.subf %123, %139 : vector<8x32xf32>
    %cst_52 = arith.constant 9.99999974E-6 : f32
    %141 = vector.broadcast %cst_52 : f32 to vector<8x1xf32>
    %142 = arith.addf %138, %141 : vector<8x1xf32>
    %143 = math.rsqrt %142 : vector<8x1xf32>
    %144 = vector.broadcast %143 : vector<8x1xf32> to vector<8x32xf32>
    %145 = arith.mulf %140, %144 : vector<8x32xf32>
    %146 = vector.shape_cast %125 : vector<32xf32> to vector<1x32xf32>
    %147 = vector.broadcast %146 : vector<1x32xf32> to vector<8x32xf32>
    %148 = arith.mulf %145, %147 : vector<8x32xf32>
    %149 = vector.shape_cast %127 : vector<32xf32> to vector<1x32xf32>
    %150 = vector.broadcast %149 : vector<1x32xf32> to vector<8x32xf32>
    %151 = arith.addf %148, %150 : vector<8x32xf32>
    %152 = arith.truncf %151 : vector<8x32xf32> to vector<8x32xbf16>
    %c0_53 = arith.constant 0 : index
    %c0_54 = arith.constant 0 : index
    %153 = vector.load %arg10[%c0_53, %c0_54] : memref<32x128xbf16, #tpu.memory_space<vmem>>, vector<32x128xbf16>
    %cst_55 = arith.constant dense<0.000000e+00> : vector<8x128xf32>
    %154 = tpu.matmul %152, %153, %cst_55 {dimension_numbers = #tpu.dot_dimension_numbers<[1], [0], [0], [1], [0, 0, 1, 1], [], []>} : vector<8x32xbf16>, vector<32x128xbf16>, vector<8x128xf32> -> vector<8x128xf32>
    %c0_56 = arith.constant 0 : index
    %c0_57 = arith.constant 0 : index
    %155 = vector.load %arg11[%c0_56, %c0_57] : memref<1x128xf32, #tpu.memory_space<vmem>>, vector<1x128xf32>
    %156 = vector.shape_cast %155 : vector<1x128xf32> to vector<128xf32>
    %157 = vector.shape_cast %156 : vector<128xf32> to vector<1x128xf32>
    %158 = vector.broadcast %157 : vector<1x128xf32> to vector<8x128xf32>
    %159 = arith.addf %154, %158 : vector<8x128xf32>
    %cst_58 = arith.constant 1.702000e+00 : f32
    %160 = vector.broadcast %cst_58 : f32 to vector<8x128xf32>
    %161 = arith.mulf %160, %159 : vector<8x128xf32>
    %162 = arith.negf %161 : vector<8x128xf32>
    %163 = math.exp %162 : vector<8x128xf32>
    %cst_59 = arith.constant 1.000000e+00 : f32
    %164 = vector.broadcast %cst_59 : f32 to vector<8x128xf32>
    %165 = arith.addf %164, %163 : vector<8x128xf32>
    %166 = arith.divf %164, %165 : vector<8x128xf32>
    %167 = arith.mulf %159, %166 : vector<8x128xf32>
    %168 = arith.truncf %167 : vector<8x128xf32> to vector<8x128xbf16>
    %c0_60 = arith.constant 0 : index
    %c0_61 = arith.constant 0 : index
    %169 = vector.load %arg12[%c0_60, %c0_61] : memref<128x32xbf16, #tpu.memory_space<vmem>>, vector<128x32xbf16>
    %cst_62 = arith.constant dense<0.000000e+00> : vector<8x32xf32>
    %170 = tpu.matmul %168, %169, %cst_62 {dimension_numbers = #tpu.dot_dimension_numbers<[1], [0], [0], [1], [0, 0, 1, 1], [], []>} : vector<8x128xbf16>, vector<128x32xbf16>, vector<8x32xf32> -> vector<8x32xf32>
    %c0_63 = arith.constant 0 : index
    %c0_64 = arith.constant 0 : index
    %171 = vector.load %arg13[%c0_63, %c0_64] : memref<1x32xf32, #tpu.memory_space<vmem>>, vector<1x32xf32>
    %172 = vector.shape_cast %171 : vector<1x32xf32> to vector<32xf32>
    %173 = vector.shape_cast %172 : vector<32xf32> to vector<1x32xf32>
    %174 = vector.broadcast %173 : vector<1x32xf32> to vector<8x32xf32>
    %175 = arith.addf %170, %174 : vector<8x32xf32>
    %176 = arith.addf %123, %175 : vector<8x32xf32>
    %c0_65 = arith.constant 0 : index
    %c0_66 = arith.constant 0 : index
    %c0_67 = arith.constant 0 : index
    %177 = vector.load %arg14[%c0_65, %c0_66, %c0_67] : memref<1x8x32xf32, #tpu.memory_space<vmem>>, vector<1x8x32xf32>
    %178 = vector.shape_cast %177 : vector<1x8x32xf32> to vector<8x32xf32>
    %179 = vector.shape_cast %176 : vector<8x32xf32> to vector<1x8x32xf32>
    tpu.vector_store %arg14[%c0_65, %c0_66, %c0_67], %179 {strides = array<i32>} : memref<1x8x32xf32, #tpu.memory_space<vmem>>, vector<1x8x32xf32>,
    return
  }
  func.func @transform_0(%arg0: i32) -> (i32, i32, i32) {
    %c0_i32 = arith.constant 0 : i32
    %c0_i32_0 = arith.constant 0 : i32
    %c0_i32_1 = arith.constant 0 : i32
    return %arg0, %c0_i32, %c0_i32_0 : i32, i32, i32
  }
  func.func @transform_1(%arg0: i32) -> (i32, i32) {
    %c0_i32 = arith.constant 0 : i32
    %c0_i32_0 = arith.constant 0 : i32
    %c0_i32_1 = arith.constant 0 : i32
    return %c0_i32, %c0_i32_0 : i32, i32
  }
  func.func @transform_2(%arg0: i32) -> (i32, i32) {
    %c0_i32 = arith.constant 0 : i32
    %c0_i32_0 = arith.constant 0 : i32
    %c0_i32_1 = arith.constant 0 : i32
    return %c0_i32, %c0_i32_0 : i32, i32
  }
  func.func @transform_3(%arg0: i32) -> (i32, i32) {
    %c0_i32 = arith.constant 0 : i32
    %c0_i32_0 = arith.constant 0 : i32
    %c0_i32_1 = arith.constant 0 : i32
    return %c0_i32, %c0_i32_0 : i32, i32
  }
  func.func @transform_4(%arg0: i32) -> (i32, i32) {
    %c0_i32 = arith.constant 0 : i32
    %c0_i32_0 = arith.constant 0 : i32
    %c0_i32_1 = arith.constant 0 : i32
    return %c0_i32, %c0_i32_0 : i32, i32
  }
  func.func @transform_5(%arg0: i32) -> (i32, i32) {
    %c0_i32 = arith.constant 0 : i32
    %c0_i32_0 = arith.constant 0 : i32
    %c0_i32_1 = arith.constant 0 : i32
    return %c0_i32, %c0_i32_0 : i32, i32
  }
  func.func @transform_6(%arg0: i32) -> (i32, i32) {
    %c0_i32 = arith.constant 0 : i32
    %c0_i32_0 = arith.constant 0 : i32
    %c0_i32_1 = arith.constant 0 : i32
    return %c0_i32, %c0_i32_0 : i32, i32
  }
  func.func @transform_7(%arg0: i32) -> (i32, i32) {
    %c0_i32 = arith.constant 0 : i32
    %c0_i32_0 = arith.constant 0 : i32
    %c0_i32_1 = arith.constant 0 : i32
    return %c0_i32, %c0_i32_0 : i32, i32
  }
  func.func @transform_8(%arg0: i32) -> (i32, i32) {
    %c0_i32 = arith.constant 0 : i32
    %c0_i32_0 = arith.constant 0 : i32
    %c0_i32_1 = arith.constant 0 : i32
    return %c0_i32, %c0_i32_0 : i32, i32
  }
  func.func @transform_9(%arg0: i32) -> (i32, i32) {
    %c0_i32 = arith.constant 0 : i32
    %c0_i32_0 = arith.constant 0 : i32
    %c0_i32_1 = arith.constant 0 : i32
    return %c0_i32, %c0_i32_0 : i32, i32
  }
  func.func @transform_10(%arg0: i32) -> (i32, i32) {
    %c0_i32 = arith.constant 0 : i32
    %c0_i32_0 = arith.constant 0 : i32
    %c0_i32_1 = arith.constant 0 : i32
    return %c0_i32, %c0_i32_0 : i32, i32
  }
  func.func @transform_11(%arg0: i32) -> (i32, i32) {
    %c0_i32 = arith.constant 0 : i32
    %c0_i32_0 = arith.constant 0 : i32
    %c0_i32_1 = arith.constant 0 : i32
    return %c0_i32, %c0_i32_0 : i32, i32
  }
  func.func @transform_12(%arg0: i32) -> (i32, i32) {
    %c0_i32 = arith.constant 0 : i32
    %c0_i32_0 = arith.constant 0 : i32
    %c0_i32_1 = arith.constant 0 : i32
    return %c0_i32, %c0_i32_0 : i32, i32
  }
  func.func @transform_13(%arg0: i32) -> (i32, i32, i32) {
    %c0_i32 = arith.constant 0 : i32
    %c0_i32_0 = arith.constant 0 : i32
    %c0_i32_1 = arith.constant 0 : i32
    return %arg0, %c0_i32, %c0_i32_0 : i32, i32, i32
  }
}

</mosaic_0001>

<llo_original>
// kernel: tpu_custom_call.1
$region0: #{tpu_custom_call.1}
  #allocation0 [shape = 'u32[]', space=smem, size = 0x4, offset = 0x4, fixed_abs, tag = 'smem constant byte address 0x4 - core index']
  #allocation1 [shape = 'u32[144,128]{1,0:T(1,128)}', space=vmem, size = 0x12000, scoped, tag = 'internal scratch']
  #allocation2 [shape = 'f32[8,32]{1,0:T(8,128)}', space=vmem, size = 0x1000, scoped, tag = 'scratch operand']
  %s0 = inlined_call_operand.hbm [shape: f32[2,8,32], index: 0, kind: input, shape index: {}]
  %s1 = inlined_call_operand.hbm [shape: f32[1,32], index: 1, kind: input, shape index: {}]
  %s2 = inlined_call_operand.hbm [shape: f32[1,32], index: 2, kind: input, shape index: {}]
  %s3 = inlined_call_operand.hbm [shape: bf16[32,96], index: 3, kind: input, shape index: {}]
  %s4 = inlined_call_operand.hbm [shape: f32[1,96], index: 4, kind: input, shape index: {}]
  %s5 = inlined_call_operand.hbm [shape: bf16[32,32], index: 5, kind: input, shape index: {}]
  %s6 = inlined_call_operand.hbm [shape: f32[1,32], index: 6, kind: input, shape index: {}]
  %s7 = inlined_call_operand.hbm [shape: f32[1,32], index: 7, kind: input, shape index: {}]
  %s8 = inlined_call_operand.hbm [shape: f32[1,32], index: 8, kind: input, shape index: {}]
  %s9 = inlined_call_operand.hbm [shape: bf16[32,128], index: 9, kind: input, shape index: {}]
  %s10 = inlined_call_operand.hbm [shape: f32[1,128], index: 10, kind: input, shape index: {}]
  %s11 = inlined_call_operand.hbm [shape: bf16[128,32], index: 11, kind: input, shape index: {}]
  %s12 = inlined_call_operand.hbm [shape: f32[1,32], index: 12, kind: input, shape index: {}]
  %s13 = inlined_call_operand.hbm [shape: f32[2,8,32], index: 13, kind: output, shape index: {}]
  %s14 = sld [smem:[#allocation0]]
  $region137: #{tpu_custom_call.1} parent=0
    _
  %s16 = ssub.s32 1, %s14
  %s17 = scalar_select 0, %s16, %s14
  $region1: #{tpu_custom_call.1} parent=0
    #allocation3 [shape = 'u8[8192]{0}', space=vmem, size = 0x2000, scoped, tag = 'input window, operand 0']
    #allocation4 [shape = 's32[2]{0}', space=sflag, size = 0x8, scoped, tag = 'scoped memory for tpu_custom_call.1']
    #allocation5 [shape = 's32[2]{0}', space=sflag, size = 0x8, scoped, tag = 'scoped memory for tpu_custom_call.1']
    #allocation6 [shape = 'u8[512]{0}', space=vmem, size = 0x400, scoped, tag = 'input window, operand 1, single buffered']
    #allocation7 [shape = 's32[1]{0}', space=sflag, size = 0x4, scoped, tag = 'scoped memory for tpu_custom_call.1']
    #allocation8 [shape = 'u8[512]{0}', space=vmem, size = 0x400, scoped, tag = 'input window, operand 2, single buffered']
    #allocation9 [shape = 'u8[8192]{0}', space=vmem, size = 0x2000, scoped, tag = 'input window, operand 3, single buffered']
    #allocation10 [shape = 's32[1]{0}', space=sflag, size = 0x4, scoped, tag = 'scoped memory for tpu_custom_call.1']
    #allocation11 [shape = 'u8[512]{0}', space=vmem, size = 0x400, scoped, tag = 'input window, operand 4, single buffered']
    #allocation12 [shape = 'u8[8192]{0}', space=vmem, size = 0x2000, scoped, tag = 'input window, operand 5, single buffered']
    #allocation13 [shape = 's32[1]{0}', space=sflag, size = 0x4, scoped, tag = 'scoped memory for tpu_custom_call.1']
    #allocation14 [shape = 'u8[512]{0}', space=vmem, size = 0x400, scoped, tag = 'input window, operand 6, single buffered']
    #allocation15 [shape = 'u8[512]{0}', space=vmem, size = 0x400, scoped, tag = 'input window, operand 7, single buffered']
    #allocation16 [shape = 's32[1]{0}', space=sflag, size = 0x4, scoped, tag = 'scoped memory for tpu_custom_call.1']
    #allocation17 [shape = 'u8[512]{0}', space=vmem, size = 0x400, scoped, tag = 'input window, operand 8, single buffered']
    #allocation18 [shape = 'u8[8192]{0}', space=vmem, size = 0x2000, scoped, tag = 'input window, operand 9, single buffered']
    #allocation19 [shape = 's32[1]{0}', space=sflag, size = 0x4, scoped, tag = 'scoped memory for tpu_custom_call.1']
    #allocation20 [shape = 'u8[512]{0}', space=vmem, size = 0x400, scoped, tag = 'input window, operand 10, single buffered']
    #allocation21 [shape = 'u8[32768]{0}', space=vmem, size = 0x8000, scoped, tag = 'input window, operand 11, single buffered']
    #allocation22 [shape = 's32[1]{0}', space=sflag, size = 0x4, scoped, tag = 'scoped memory for tpu_custom_call.1']
    #allocation23 [shape = 'u8[512]{0}', space=vmem, size = 0x400, scoped, tag = 'input window, operand 12, single buffered']
    #allocation24 [shape = 'u8[8192]{0}', space=vmem, size = 0x2000, scoped, tag = 'output window, operand 0']
    %18 = vsyncpa [#allocation4], 0
    %s19 = scalar_lea.sflag [#allocation4], 1
    %20 = vsyncpa %s19, 0
    %21 = vsyncpa [#allocation7], 0
    %22 = vsyncpa [#allocation10], 0
    %23 = vsyncpa [#allocation13], 0
    %24 = vsyncpa [#allocation16], 0
    %25 = vsyncpa [#allocation19], 0
    %26 = vsyncpa [#allocation22], 0
    %27 = vsyncpa [#allocation5], 0
    %s28 = scalar_lea.sflag [#allocation5], 1
    %29 = vsyncpa %s28, 0
    loop: start=0, step=1, limit=4
    $region2: #{tpu_custom_call.1} parent=1 // loop_pre_header
      _
    $region3: #{tpu_custom_call.1} parent=1 // loop_header
      %s31 = sphi 0, %s35
      %p32 = scmp.ge.s32.totalorder %s31, 4
      %s41 = sphi 0, %s43
      %s44 = sphi 0, %s41
      %s45 = sphi 0, %s44
      %s61 = sphi 0, %s45
      %s65 = sphi 0, %s65
      %s67 = sphi 0, %s65
      %s68 = sphi 0, %s67
      %s82 = sphi 0, %s68
      %s86 = sphi 0, %s86
      %s88 = sphi 0, %s86
      %s89 = sphi 0, %s88
      %s103 = sphi 0, %s89
      %s107 = sphi 0, %s107
      %s109 = sphi 0, %s107
      %s110 = sphi 0, %s109
      %s124 = sphi 0, %s110
      %s128 = sphi 0, %s128
      %s130 = sphi 0, %s128
      %s131 = sphi 0, %s130
      %s145 = sphi 0, %s131
      %s149 = sphi 0, %s149
      %s151 = sphi 0, %s149
      %s152 = sphi 0, %s151
      %s166 = sphi 0, %s152
      %s170 = sphi 0, %s170
      %s172 = sphi 0, %s170
      %s173 = sphi 0, %s172
      %s187 = sphi 0, %s173
      %s191 = sphi 0, %s191
      %s193 = sphi 0, %s191
      %s194 = sphi 0, %s193
      %s208 = sphi 0, %s194
      %s212 = sphi 0, %s212
      %s214 = sphi 0, %s212
      %s215 = sphi 0, %s214
      %s229 = sphi 0, %s215
      %s233 = sphi 0, %s233
      %s235 = sphi 0, %s233
      %s236 = sphi 0, %s235
      %s250 = sphi 0, %s236
      %s254 = sphi 0, %s254
      %s256 = sphi 0, %s254
      %s257 = sphi 0, %s256
      %s271 = sphi 0, %s257
      %s275 = sphi 0, %s275
      %s277 = sphi 0, %s275
      %s278 = sphi 0, %s277
      %s292 = sphi 0, %s278
      %s296 = sphi 0, %s296
      %s298 = sphi 0, %s296
      %s299 = sphi 0, %s298
      %s313 = sphi 0, %s299
      %s319 = sphi 0, %s321
      %s322 = sphi 0, %s319
      %s323 = sphi 0, %s322
      %s339 = sphi 0, %s323
    $region4: #{tpu_custom_call.1} parent=1 // loop_header_branch
      %34 = sbr.rel (%p32) target = $region8
    $region5: #{tpu_custom_call.1} parent=1 // loop_body
      %s36 = ssub.s32 %s31, 1
      %s37 = ssub.s32 %s31, 2
      %s38 = sadd.s32 %s31, 1
      %s39 = ssub.s32 %s31, %s38
      %p40 = scmp.eq.s32.totalorder %s39, 0
      %s42 = sadd.s32 %s41, 1
      %s43 = scalar_select %p40, %s41, %s42
      %p46 = pneg %p40
      %p47 = scmp.eq.s32.totalorder %s31, 1
      %p48 = por %p46, %p47
      %p49 = scmp.ne.s32.totalorder %s41, %s44
      %p50 = scmp.eq.s32.totalorder %s31, 0
      %p51 = por %p49, %p50
      %p52 = scmp.ne.s32.totalorder %s41, %s44
      %p53 = scmp.eq.s32.totalorder %s36, 1
      %p54 = por %p52, %p53
      %p55 = scmp.ne.s32.totalorder %s44, %s45
      %p56 = scmp.eq.s32.totalorder %s36, 0
      %p57 = por %p55, %p56
      %p58 = scmp.ne.s32.totalorder %s44, %s45
      %p59 = scmp.eq.s32.totalorder %s37, 1
      %p60 = por %p58, %p59
      %p62 = scmp.ne.s32.totalorder %s45, %s61
      %p63 = scmp.eq.s32.totalorder %s37, 0
      %p64 = por %p62, %p63
      %s66 = sadd.s32 %s65, 1
      %p69 = scmp.eq.s32.totalorder %s31, 1
      %p70 = scmp.ne.s32.totalorder %s65, %s67
      %p71 = scmp.eq.s32.totalorder %s31, 0
      %p72 = por %p70, %p71
      %p73 = scmp.ne.s32.totalorder %s65, %s67
      %p74 = scmp.eq.s32.totalorder %s36, 1
      %p75 = por %p73, %p74
      %p76 = scmp.ne.s32.totalorder %s67, %s68
      %p77 = scmp.eq.s32.totalorder %s36, 0
      %p78 = por %p76, %p77
      %p79 = scmp.ne.s32.totalorder %s67, %s68
      %p80 = scmp.eq.s32.totalorder %s37, 1
      %p81 = por %p79, %p80
      %p83 = scmp.ne.s32.totalorder %s68, %s82
      %p84 = scmp.eq.s32.totalorder %s37, 0
      %p85 = por %p83, %p84
      %s87 = sadd.s32 %s86, 1
      %p90 = scmp.eq.s32.totalorder %s31, 1
      %p91 = scmp.ne.s32.totalorder %s86, %s88
      %p92 = scmp.eq.s32.totalorder %s31, 0
      %p93 = por %p91, %p92
      %p94 = scmp.ne.s32.totalorder %s86, %s88
      %p95 = scmp.eq.s32.totalorder %s36, 1
      %p96 = por %p94, %p95
      %p97 = scmp.ne.s32.totalorder %s88, %s89
      %p98 = scmp.eq.s32.totalorder %s36, 0
      %p99 = por %p97, %p98
      %p100 = scmp.ne.s32.totalorder %s88, %s89
      %p101 = scmp.eq.s32.totalorder %s37, 1
      %p102 = por %p100, %p101
      %p104 = scmp.ne.s32.totalorder %s89, %s103
      %p105 = scmp.eq.s32.totalorder %s37, 0
      %p106 = por %p104, %p105
      %s108 = sadd.s32 %s107, 1
      %p111 = scmp.eq.s32.totalorder %s31, 1
      %p112 = scmp.ne.s32.totalorder %s107, %s109
      %p113 = scmp.eq.s32.totalorder %s31, 0
      %p114 = por %p112, %p113
      %p115 = scmp.ne.s32.totalorder %s107, %s109
      %p116 = scmp.eq.s32.totalorder %s36, 1
      %p117 = por %p115, %p116
      %p118 = scmp.ne.s32.totalorder %s109, %s110
      %p119 = scmp.eq.s32.totalorder %s36, 0
      %p120 = por %p118, %p119
      %p121 = scmp.ne.s32.totalorder %s109, %s110
      %p122 = scmp.eq.s32.totalorder %s37, 1
      %p123 = por %p121, %p122
      %p125 = scmp.ne.s32.totalorder %s110, %s124
      %p126 = scmp.eq.s32.totalorder %s37, 0
      %p127 = por %p125, %p126
      %s129 = sadd.s32 %s128, 1
      %p132 = scmp.eq.s32.totalorder %s31, 1
      %p133 = scmp.ne.s32.totalorder %s128, %s130
      %p134 = scmp.eq.s32.totalorder %s31, 0
      %p135 = por %p133, %p134
      %p136 = scmp.ne.s32.totalorder %s128, %s130
      %p137 = scmp.eq.s32.totalorder %s36, 1
      %p138 = por %p136, %p137
      %p139 = scmp.ne.s32.totalorder %s130, %s131
      %p140 = scmp.eq.s32.totalorder %s36, 0
      %p141 = por %p139, %p140
      %p142 = scmp.ne.s32.totalorder %s130, %s131
      %p143 = scmp.eq.s32.totalorder %s37, 1
      %p144 = por %p142, %p143
      %p146 = scmp.ne.s32.totalorder %s131, %s145
      %p147 = scmp.eq.s32.totalorder %s37, 0
      %p148 = por %p146, %p147
      %s150 = sadd.s32 %s149, 1
      %p153 = scmp.eq.s32.totalorder %s31, 1
      %p154 = scmp.ne.s32.totalorder %s149, %s151
      %p155 = scmp.eq.s32.totalorder %s31, 0
      %p156 = por %p154, %p155
      %p157 = scmp.ne.s32.totalorder %s149, %s151
      %p158 = scmp.eq.s32.totalorder %s36, 1
      %p159 = por %p157, %p158
      %p160 = scmp.ne.s32.totalorder %s151, %s152
      %p161 = scmp.eq.s32.totalorder %s36, 0
      %p162 = por %p160, %p161
      %p163 = scmp.ne.s32.totalorder %s151, %s152
      %p164 = scmp.eq.s32.totalorder %s37, 1
      %p165 = por %p163, %p164
      %p167 = scmp.ne.s32.totalorder %s152, %s166
      %p168 = scmp.eq.s32.totalorder %s37, 0
      %p169 = por %p167, %p168
      %s171 = sadd.s32 %s170, 1
      %p174 = scmp.eq.s32.totalorder %s31, 1
      %p175 = scmp.ne.s32.totalorder %s170, %s172
      %p176 = scmp.eq.s32.totalorder %s31, 0
      %p177 = por %p175, %p176
      %p178 = scmp.ne.s32.totalorder %s170, %s172
      %p179 = scmp.eq.s32.totalorder %s36, 1
      %p180 = por %p178, %p179
      %p181 = scmp.ne.s32.totalorder %s172, %s173
      %p182 = scmp.eq.s32.totalorder %s36, 0
      %p183 = por %p181, %p182
      %p184 = scmp.ne.s32.totalorder %s172, %s173
      %p185 = scmp.eq.s32.totalorder %s37, 1
      %p186 = por %p184, %p185
      %p188 = scmp.ne.s32.totalorder %s173, %s187
      %p189 = scmp.eq.s32.totalorder %s37, 0
      %p190 = por %p188, %p189
      %s192 = sadd.s32 %s191, 1
      %p195 = scmp.eq.s32.totalorder %s31, 1
      %p196 = scmp.ne.s32.totalorder %s191, %s193
      %p197 = scmp.eq.s32.totalorder %s31, 0
      %p198 = por %p196, %p197
      %p199 = scmp.ne.s32.totalorder %s191, %s193
      %p200 = scmp.eq.s32.totalorder %s36, 1
      %p201 = por %p199, %p200
      %p202 = scmp.ne.s32.totalorder %s193, %s194
      %p203 = scmp.eq.s32.totalorder %s36, 0
      %p204 = por %p202, %p203
      %p205 = scmp.ne.s32.totalorder %s193, %s194
      %p206 = scmp.eq.s32.totalorder %s37, 1
      %p207 = por %p205, %p206
      %p209 = scmp.ne.s32.totalorder %s194, %s208
      %p210 = scmp.eq.s32.totalorder %s37, 0
      %p211 = por %p209, %p210
      %s213 = sadd.s32 %s212, 1
      %p216 = scmp.eq.s32.totalorder %s31, 1
      %p217 = scmp.ne.s32.totalorder %s212, %s214
      %p218 = scmp.eq.s32.totalorder %s31, 0
      %p219 = por %p217, %p218
      %p220 = scmp.ne.s32.totalorder %s212, %s214
      %p221 = scmp.eq.s32.totalorder %s36, 1
      %p222 = por %p220, %p221
      %p223 = scmp.ne.s32.totalorder %s214, %s215
      %p224 = scmp.eq.s32.totalorder %s36, 0
      %p225 = por %p223, %p224
      %p226 = scmp.ne.s32.totalorder %s214, %s215
      %p227 = scmp.eq.s32.totalorder %s37, 1
      %p228 = por %p226, %p227
      %p230 = scmp.ne.s32.totalorder %s215, %s229
      %p231 = scmp.eq.s32.totalorder %s37, 0
      %p232 = por %p230, %p231
      %s234 = sadd.s32 %s233, 1
      %p237 = scmp.eq.s32.totalorder %s31, 1
      %p238 = scmp.ne.s32.totalorder %s233, %s235
      %p239 = scmp.eq.s32.totalorder %s31, 0
      %p240 = por %p238, %p239
      %p241 = scmp.ne.s32.totalorder %s233, %s235
      %p242 = scmp.eq.s32.totalorder %s36, 1
      %p243 = por %p241, %p242
      %p244 = scmp.ne.s32.totalorder %s235, %s236
      %p245 = scmp.eq.s32.totalorder %s36, 0
      %p246 = por %p244, %p245
      %p247 = scmp.ne.s32.totalorder %s235, %s236
      %p248 = scmp.eq.s32.totalorder %s37, 1
      %p249 = por %p247, %p248
      %p251 = scmp.ne.s32.totalorder %s236, %s250
      %p252 = scmp.eq.s32.totalorder %s37, 0
      %p253 = por %p251, %p252
      %s255 = sadd.s32 %s254, 1
      %p258 = scmp.eq.s32.totalorder %s31, 1
      %p259 = scmp.ne.s32.totalorder %s254, %s256
      %p260 = scmp.eq.s32.totalorder %s31, 0
      %p261 = por %p259, %p260
      %p262 = scmp.ne.s32.totalorder %s254, %s256
      %p263 = scmp.eq.s32.totalorder %s36, 1
      %p264 = por %p262, %p263
      %p265 = scmp.ne.s32.totalorder %s256, %s257
      %p266 = scmp.eq.s32.totalorder %s36, 0
      %p267 = por %p265, %p266
      %p268 = scmp.ne.s32.totalorder %s256, %s257
      %p269 = scmp.eq.s32.totalorder %s37, 1
      %p270 = por %p268, %p269
      %p272 = scmp.ne.s32.totalorder %s257, %s271
      %p273 = scmp.eq.s32.totalorder %s37, 0
      %p274 = por %p272, %p273
      %s276 = sadd.s32 %s275, 1
      %p279 = scmp.eq.s32.totalorder %s31, 1
      %p280 = scmp.ne.s32.totalorder %s275, %s277
      %p281 = scmp.eq.s32.totalorder %s31, 0
      %p282 = por %p280, %p281
      %p283 = scmp.ne.s32.totalorder %s275, %s277
      %p284 = scmp.eq.s32.totalorder %s36, 1
      %p285 = por %p283, %p284
      %p286 = scmp.ne.s32.totalorder %s277, %s278
      %p287 = scmp.eq.s32.totalorder %s36, 0
      %p288 = por %p286, %p287
      %p289 = scmp.ne.s32.totalorder %s277, %s278
      %p290 = scmp.eq.s32.totalorder %s37, 1
      %p291 = por %p289, %p290
      %p293 = scmp.ne.s32.totalorder %s278, %s292
      %p294 = scmp.eq.s32.totalorder %s37, 0
      %p295 = por %p293, %p294
      %s297 = sadd.s32 %s296, 1
      %p300 = scmp.eq.s32.totalorder %s31, 1
      %p301 = scmp.ne.s32.totalorder %s296, %s298
      %p302 = scmp.eq.s32.totalorder %s31, 0
      %p303 = por %p301, %p302
      %p304 = scmp.ne.s32.totalorder %s296, %s298
      %p305 = scmp.eq.s32.totalorder %s36, 1
      %p306 = por %p304, %p305
      %p307 = scmp.ne.s32.totalorder %s298, %s299
      %p308 = scmp.eq.s32.totalorder %s36, 0
      %p309 = por %p307, %p308
      %p310 = scmp.ne.s32.totalorder %s298, %s299
      %p311 = scmp.eq.s32.totalorder %s37, 1
      %p312 = por %p310, %p311
      %p314 = scmp.ne.s32.totalorder %s299, %s313
      %p315 = scmp.eq.s32.totalorder %s37, 0
      %p316 = por %p314, %p315
      %s317 = ssub.s32 %s31, %s38
      %p318 = scmp.eq.s32.totalorder %s317, 0
      %s320 = sadd.s32 %s319, 1
      %s321 = scalar_select %p318, %s319, %s320
      %p324 = pneg %p318
      %p325 = scmp.eq.s32.totalorder %s31, 1
      %p326 = por %p324, %p325
      %p327 = scmp.ne.s32.totalorder %s319, %s322
      %p328 = scmp.eq.s32.totalorder %s31, 0
      %p329 = por %p327, %p328
      %p330 = scmp.ne.s32.totalorder %s319, %s322
      %p331 = scmp.eq.s32.totalorder %s36, 1
      %p332 = por %p330, %p331
      %p333 = scmp.ne.s32.totalorder %s322, %s323
      %p334 = scmp.eq.s32.totalorder %s36, 0
      %p335 = por %p333, %p334
      %p336 = scmp.ne.s32.totalorder %s322, %s323
      %p337 = scmp.eq.s32.totalorder %s37, 1
      %p338 = por %p336, %p337
      %p340 = scmp.ne.s32.totalorder %s323, %s339
      %p341 = scmp.eq.s32.totalorder %s37, 0
      %p342 = por %p340, %p341
      %p343 = scmp.le.s32.totalorder 1, %s31
      %p344 = scmp.lt.s32.totalorder %s31, 3
      %p345 = pnand %p343, %p344
      %p346 = pneg %p345
      // Predicated region
      $region9: #{tpu_custom_call.1} parent=5 // pred_check
        _
      $region10: #{tpu_custom_call.1} parent=5 // pred_check_branch
        %348 = sbr.rel (%p345) target = $region12
      $region11: #{tpu_custom_call.1} parent=5 // pred_region
        %s349 = ssub.s32 %s31, 1
        // Predicated region
        $region13: #{tpu_custom_call.1} parent=11 // pred_check
          %p350 = pneg %p78
        $region14: #{tpu_custom_call.1} parent=11 // pred_check_branch
          %352 = sbr.rel (%p350) target = $region16
        $region15: #{tpu_custom_call.1} parent=11 // pred_region
          %s354 = ssub.s32 16, 16
          %355 = vsyncadd [#allocation7], %s354
          %s357 = sshll.u32 [#allocation6], 4
          %s358 = int_to_ptr.vmem [resolvable:$true] %s357
          %360 = dma.hbm_to_vmem [thread:$0]  %s1, 16, %s358, [#allocation7]
        $region16: #{tpu_custom_call.1} parent=11 // pred_fallthru
          _
        // Predicated region
        $region17: #{tpu_custom_call.1} parent=11 // pred_check
          %p361 = pneg %p99
        $region18: #{tpu_custom_call.1} parent=11 // pred_check_branch
          %363 = sbr.rel (%p361) target = $region20
        $region19: #{tpu_custom_call.1} parent=11 // pred_region
          %s365 = ssub.s32 16, 16
          %366 = vsyncadd [#allocation7], %s365
          %s368 = sshll.u32 [#allocation8], 4
          %s369 = int_to_ptr.vmem [resolvable:$true] %s368
          %371 = dma.hbm_to_vmem [thread:$0]  %s2, 16, %s369, [#allocation7]
        $region20: #{tpu_custom_call.1} parent=11 // pred_fallthru
          _
        // Predicated region
        $region21: #{tpu_custom_call.1} parent=11 // pred_check
          %p372 = pneg %p120
        $region22: #{tpu_custom_call.1} parent=11 // pred_check_branch
          %374 = sbr.rel (%p372) target = $region24
        $region23: #{tpu_custom_call.1} parent=11 // pred_region
          %s376 = ssub.s32 256, 256
          %377 = vsyncadd [#allocation10], %s376
          %s378 = sshll.u32 [#allocation9], 4
          %s379 = int_to_ptr.vmem [resolvable:$true] %s378
          %384 = dma.hbm_to_vmem [thread:$0]  %s3, 256, %s379, [#allocation10], 64, 64, 4
        $region24: #{tpu_custom_call.1} parent=11 // pred_fallthru
          _
        // Predicated region
        $region25: #{tpu_custom_call.1} parent=11 // pred_check
          %p385 = pneg %p141
        $region26: #{tpu_custom_call.1} parent=11 // pred_check_branch
          %387 = sbr.rel (%p385) target = $region28
        $region27: #{tpu_custom_call.1} parent=11 // pred_region
          %s389 = ssub.s32 16, 16
          %390 = vsyncadd [#allocation10], %s389
          %s392 = sshll.u32 [#allocation11], 4
          %s393 = int_to_ptr.vmem [resolvable:$true] %s392
          %395 = dma.hbm_to_vmem [thread:$0]  %s4, 16, %s393, [#allocation10]
        $region28: #{tpu_custom_call.1} parent=11 // pred_fallthru
          _
        // Predicated region
        $region29: #{tpu_custom_call.1} parent=11 // pred_check
          %p396 = pneg %p162
        $region30: #{tpu_custom_call.1} parent=11 // pred_check_branch
          %398 = sbr.rel (%p396) target = $region32
        $region31: #{tpu_custom_call.1} parent=11 // pred_region
          %s400 = ssub.s32 256, 256
          %401 = vsyncadd [#allocation13], %s400
          %s402 = sshll.u32 [#allocation12], 4
          %s403 = int_to_ptr.vmem [resolvable:$true] %s402
          %408 = dma.hbm_to_vmem [thread:$0]  %s5, 256, %s403, [#allocation13], 64, 64, 4
        $region32: #{tpu_custom_call.1} parent=11 // pred_fallthru
          _
        // Predicated region
        $region33: #{tpu_custom_call.1} parent=11 // pred_check
          %p409 = pneg %p183
        $region34: #{tpu_custom_call.1} parent=11 // pred_check_branch
          %411 = sbr.rel (%p409) target = $region36
        $region35: #{tpu_custom_call.1} parent=11 // pred_region
          %s413 = ssub.s32 16, 16
          %414 = vsyncadd [#allocation13], %s413
          %s416 = sshll.u32 [#allocation14], 4
          %s417 = int_to_ptr.vmem [resolvable:$true] %s416
          %419 = dma.hbm_to_vmem [thread:$0]  %s6, 16, %s417, [#allocation13]
        $region36: #{tpu_custom_call.1} parent=11 // pred_fallthru
          _
        // Predicated region
        $region37: #{tpu_custom_call.1} parent=11 // pred_check
          %p420 = pneg %p204
        $region38: #{tpu_custom_call.1} parent=11 // pred_check_branch
          %422 = sbr.rel (%p420) target = $region40
        $region39: #{tpu_custom_call.1} parent=11 // pred_region
          %s424 = ssub.s32 16, 16
          %425 = vsyncadd [#allocation16], %s424
          %s427 = sshll.u32 [#allocation15], 4
          %s428 = int_to_ptr.vmem [resolvable:$true] %s427
          %430 = dma.hbm_to_vmem [thread:$0]  %s7, 16, %s428, [#allocation16]
        $region40: #{tpu_custom_call.1} parent=11 // pred_fallthru
          _
        // Predicated region
        $region41: #{tpu_custom_call.1} parent=11 // pred_check
          %p431 = pneg %p225
        $region42: #{tpu_custom_call.1} parent=11 // pred_check_branch
          %433 = sbr.rel (%p431) target = $region44
        $region43: #{tpu_custom_call.1} parent=11 // pred_region
          %s435 = ssub.s32 16, 16
          %436 = vsyncadd [#allocation16], %s435
          %s438 = sshll.u32 [#allocation17], 4
          %s439 = int_to_ptr.vmem [resolvable:$true] %s438
          %441 = dma.hbm_to_vmem [thread:$0]  %s8, 16, %s439, [#allocation16]
        $region44: #{tpu_custom_call.1} parent=11 // pred_fallthru
          _
        // Predicated region
        $region45: #{tpu_custom_call.1} parent=11 // pred_check
          %p442 = pneg %p246
        $region46: #{tpu_custom_call.1} parent=11 // pred_check_branch
          %444 = sbr.rel (%p442) target = $region48
        $region47: #{tpu_custom_call.1} parent=11 // pred_region
          %s446 = ssub.s32 256, 256
          %447 = vsyncadd [#allocation19], %s446
          %s448 = sshll.u32 [#allocation18], 4
          %s449 = int_to_ptr.vmem [resolvable:$true] %s448
          %454 = dma.hbm_to_vmem [thread:$0]  %s9, 256, %s449, [#allocation19], 64, 64, 4
        $region48: #{tpu_custom_call.1} parent=11 // pred_fallthru
          _
        // Predicated region
        $region49: #{tpu_custom_call.1} parent=11 // pred_check
          %p455 = pneg %p267
        $region50: #{tpu_custom_call.1} parent=11 // pred_check_branch
          %457 = sbr.rel (%p455) target = $region52
        $region51: #{tpu_custom_call.1} parent=11 // pred_region
          %s459 = ssub.s32 16, 16
          %460 = vsyncadd [#allocation19], %s459
          %s462 = sshll.u32 [#allocation20], 4
          %s463 = int_to_ptr.vmem [resolvable:$true] %s462
          %465 = dma.hbm_to_vmem [thread:$0]  %s10, 16, %s463, [#allocation19]
        $region52: #{tpu_custom_call.1} parent=11 // pred_fallthru
          _
        // Predicated region
        $region53: #{tpu_custom_call.1} parent=11 // pred_check
          %p466 = pneg %p288
        $region54: #{tpu_custom_call.1} parent=11 // pred_check_branch
          %468 = sbr.rel (%p466) target = $region56
        $region55: #{tpu_custom_call.1} parent=11 // pred_region
          %s470 = ssub.s32 1024, 1024
          %471 = vsyncadd [#allocation22], %s470
          %s472 = sshll.u32 [#allocation21], 4
          %s473 = int_to_ptr.vmem [resolvable:$true] %s472
          %478 = dma.hbm_to_vmem [thread:$0]  %s11, 1024, %s473, [#allocation22], 64, 64, 4
        $region56: #{tpu_custom_call.1} parent=11 // pred_fallthru
          _
        // Predicated region
        $region57: #{tpu_custom_call.1} parent=11 // pred_check
          %p479 = pneg %p309
        $region58: #{tpu_custom_call.1} parent=11 // pred_check_branch
          %481 = sbr.rel (%p479) target = $region60
        $region59: #{tpu_custom_call.1} parent=11 // pred_region
          %s483 = ssub.s32 16, 16
          %484 = vsyncadd [#allocation22], %s483
          %s486 = sshll.u32 [#allocation23], 4
          %s487 = int_to_ptr.vmem [resolvable:$true] %s486
          %489 = dma.hbm_to_vmem [thread:$0]  %s12, 16, %s487, [#allocation22]
        $region60: #{tpu_custom_call.1} parent=11 // pred_fallthru
          _
      $region12: #{tpu_custom_call.1} parent=5 // pred_fallthru
        _
      %p490 = scmp.lt.s32.totalorder %s31, 2
      // Predicated region
      $region61: #{tpu_custom_call.1} parent=5 // pred_check
        %p491 = pneg %p490
      $region62: #{tpu_custom_call.1} parent=5 // pred_check_branch
        %493 = sbr.rel (%p491) target = $region64
      $region63: #{tpu_custom_call.1} parent=5 // pred_region
        // Predicated region
        $region65: #{tpu_custom_call.1} parent=63 // pred_check
          %p494 = pneg %p51
        $region66: #{tpu_custom_call.1} parent=63 // pred_check_branch
          %496 = sbr.rel (%p494) target = $region68
        $region67: #{tpu_custom_call.1} parent=63 // pred_region
          %s497 = sand.u32 %s41, 1
          %s498 = scalar_lea.sflag [#allocation4], %s497
          %s499 = sand.u32 %s41, 1
          %s500 = smul.addr %s499, 8
          %s501 = scalar_lea.vmem [#allocation3], %s500
          %s503 = ssub.s32 128, 128
          %504 = vsyncadd %s498, %s503
          %s505 = smul.addr %s31, 128
          %s506 = scalar_lea.hbm %s0, %s505
          %s508 = sshll.u32 %s501, 4
          %s509 = int_to_ptr.vmem [resolvable:$true] %s508
          %511 = dma.hbm_to_vmem [thread:$0]  %s506, 128, %s509, %s498
        $region68: #{tpu_custom_call.1} parent=63 // pred_fallthru
          _
      $region64: #{tpu_custom_call.1} parent=5 // pred_fallthru
        _
      %p512 = scmp.le.s32.totalorder 1, %s31
      %p513 = scmp.lt.s32.totalorder %s31, 3
      %p514 = pnand %p512, %p513
      %p515 = pneg %p514
      // Predicated region
      $region69: #{tpu_custom_call.1} parent=5 // pred_check
        _
      $region70: #{tpu_custom_call.1} parent=5 // pred_check_branch
        %517 = sbr.rel (%p514) target = $region72
      $region71: #{tpu_custom_call.1} parent=5 // pred_region
        %s518 = ssub.s32 %s31, 1
        %s519 = sand.u32 %s44, 1
        %s520 = scalar_lea.sflag [#allocation4], %s519
        %s521 = sand.u32 %s44, 1
        %s522 = smul.addr %s521, 8
        %s523 = scalar_lea.vmem [#allocation3], %s522
        // Predicated region
        $region73: #{tpu_custom_call.1} parent=71 // pred_check
          %p524 = pneg %p57
        $region74: #{tpu_custom_call.1} parent=71 // pred_check_branch
          %526 = sbr.rel (%p524) target = $region76
        $region75: #{tpu_custom_call.1} parent=71 // pred_region
          %527 = dma.done %s520, 128
        $region76: #{tpu_custom_call.1} parent=71 // pred_fallthru
          _
        // Predicated region
        $region77: #{tpu_custom_call.1} parent=71 // pred_check
          %p528 = pneg %p78
        $region78: #{tpu_custom_call.1} parent=71 // pred_check_branch
          %530 = sbr.rel (%p528) target = $region80
        $region79: #{tpu_custom_call.1} parent=71 // pred_region
          %531 = dma.done [#allocation7], 16
        $region80: #{tpu_custom_call.1} parent=71 // pred_fallthru
          _
        // Predicated region
        $region81: #{tpu_custom_call.1} parent=71 // pred_check
          %p532 = pneg %p99
        $region82: #{tpu_custom_call.1} parent=71 // pred_check_branch
          %534 = sbr.rel (%p532) target = $region84
        $region83: #{tpu_custom_call.1} parent=71 // pred_region
          %535 = dma.done [#allocation7], 16
        $region84: #{tpu_custom_call.1} parent=71 // pred_fallthru
          _
        // Predicated region
        $region85: #{tpu_custom_call.1} parent=71 // pred_check
          %p536 = pneg %p120
        $region86: #{tpu_custom_call.1} parent=71 // pred_check_branch
          %538 = sbr.rel (%p536) target = $region88
        $region87: #{tpu_custom_call.1} parent=71 // pred_region
          %539 = dma.done [#allocation10], 256
        $region88: #{tpu_custom_call.1} parent=71 // pred_fallthru
          _
        // Predicated region
        $region89: #{tpu_custom_call.1} parent=71 // pred_check
          %p540 = pneg %p141
        $region90: #{tpu_custom_call.1} parent=71 // pred_check_branch
          %542 = sbr.rel (%p540) target = $region92
        $region91: #{tpu_custom_call.1} parent=71 // pred_region
          %543 = dma.done [#allocation10], 16
        $region92: #{tpu_custom_call.1} parent=71 // pred_fallthru
          _
        // Predicated region
        $region93: #{tpu_custom_call.1} parent=71 // pred_check
          %p544 = pneg %p162
        $region94: #{tpu_custom_call.1} parent=71 // pred_check_branch
          %546 = sbr.rel (%p544) target = $region96
        $region95: #{tpu_custom_call.1} parent=71 // pred_region
          %547 = dma.done [#allocation13], 256
        $region96: #{tpu_custom_call.1} parent=71 // pred_fallthru
          _
        // Predicated region
        $region97: #{tpu_custom_call.1} parent=71 // pred_check
          %p548 = pneg %p183
        $region98: #{tpu_custom_call.1} parent=71 // pred_check_branch
          %550 = sbr.rel (%p548) target = $region100
        $region99: #{tpu_custom_call.1} parent=71 // pred_region
          %551 = dma.done [#allocation13], 16
        $region100: #{tpu_custom_call.1} parent=71 // pred_fallthru
          _
        // Predicated region
        $region101: #{tpu_custom_call.1} parent=71 // pred_check
          %p552 = pneg %p204
        $region102: #{tpu_custom_call.1} parent=71 // pred_check_branch
          %554 = sbr.rel (%p552) target = $region104
        $region103: #{tpu_custom_call.1} parent=71 // pred_region
          %555 = dma.done [#allocation16], 16
        $region104: #{tpu_custom_call.1} parent=71 // pred_fallthru
          _
        // Predicated region
        $region105: #{tpu_custom_call.1} parent=71 // pred_check
          %p556 = pneg %p225
        $region106: #{tpu_custom_call.1} parent=71 // pred_check_branch
          %558 = sbr.rel (%p556) target = $region108
        $region107: #{tpu_custom_call.1} parent=71 // pred_region
          %559 = dma.done [#allocation16], 16
        $region108: #{tpu_custom_call.1} parent=71 // pred_fallthru
          _
        // Predicated region
        $region109: #{tpu_custom_call.1} parent=71 // pred_check
          %p560 = pneg %p246
        $region110: #{tpu_custom_call.1} parent=71 // pred_check_branch
          %562 = sbr.rel (%p560) target = $region112
        $region111: #{tpu_custom_call.1} parent=71 // pred_region
          %563 = dma.done [#allocation19], 256
        $region112: #{tpu_custom_call.1} parent=71 // pred_fallthru
          _
        // Predicated region
        $region113: #{tpu_custom_call.1} parent=71 // pred_check
          %p564 = pneg %p267
        $region114: #{tpu_custom_call.1} parent=71 // pred_check_branch
          %566 = sbr.rel (%p564) target = $region116
        $region115: #{tpu_custom_call.1} parent=71 // pred_region
          %567 = dma.done [#allocation19], 16
        $region116: #{tpu_custom_call.1} parent=71 // pred_fallthru
          _
        // Predicated region
        $region117: #{tpu_custom_call.1} parent=71 // pred_check
          %p568 = pneg %p288
        $region118: #{tpu_custom_call.1} parent=71 // pred_check_branch
          %570 = sbr.rel (%p568) target = $region120
        $region119: #{tpu_custom_call.1} parent=71 // pred_region
          %571 = dma.done [#allocation22], 1024
        $region120: #{tpu_custom_call.1} parent=71 // pred_fallthru
          _
        // Predicated region
        $region121: #{tpu_custom_call.1} parent=71 // pred_check
          %p572 = pneg %p309
        $region122: #{tpu_custom_call.1} parent=71 // pred_check_branch
          %574 = sbr.rel (%p572) target = $region124
        $region123: #{tpu_custom_call.1} parent=71 // pred_region
          %575 = dma.done [#allocation22], 16
        $region124: #{tpu_custom_call.1} parent=71 // pred_fallthru
          _
        %s576 = sand.u32 %s44, 1
        %s577 = scalar_lea.sflag [#allocation4], %s576
        %s578 = sand.u32 %s44, 1
        %s579 = smul.addr %s578, 8
        %s580 = scalar_lea.vmem [#allocation3], %s579
        %p581 = pneg %p57
        %p582 = pneg %p54
        %p583 = pneg %p78
        %p584 = pneg %p75
        %p585 = pneg %p99
        %p586 = pneg %p96
        %p587 = pneg %p120
        %p588 = pneg %p117
        %p589 = pneg %p141
        %p590 = pneg %p138
        %p591 = pneg %p162
        %p592 = pneg %p159
        %p593 = pneg %p183
        %p594 = pneg %p180
        %p595 = pneg %p204
        %p596 = pneg %p201
        %p597 = pneg %p225
        %p598 = pneg %p222
        %p599 = pneg %p246
        %p600 = pneg %p243
        %p601 = pneg %p267
        %p602 = pneg %p264
        %p603 = pneg %p288
        %p604 = pneg %p285
        %p605 = pneg %p309
        %p606 = pneg %p306
        %p607 = pneg %p335
        %p608 = pneg %p332
        %s609 = sand.u32 %s322, 1
        %s610 = scalar_lea.sflag [#allocation5], %s609
        %s611 = sand.u32 %s322, 1
        %s612 = smul.addr %s611, 8
        %s613 = scalar_lea.vmem [#allocation24], %s612
        %v615 = vld [vmem:[%s523] sm:$0xff]
        %v616 = vld [vmem:[#allocation6] sm:$0x1]
        %v617 = vld [vmem:[#allocation8] sm:$0x1]
        %vm618 = vcmask 261120
        %v619 = vsel %vm618, %v615, 0.0
        %620 = vadd.xlane.f32.xlu0 %v619
        %v621 = vpop.xlane.xlu0 %620
        %v622 = vrcp.pop 32.0
        %v623 = vmul.f32 %v621, %v622
        %v624 = vsub.f32 %v615, %v623
        %v625 = vmul.f32 %v624, %v624
        %v626 = vsel %vm618, %v625, 0.0
        %627 = vadd.xlane.f32.xlu0 %v626
        %v628 = vpop.xlane.xlu0 %627
        %v629 = vmul.f32 %v628, %v622
        %v630 = vadd.f32 %v629, 1e-05
        %v631 = vrsqrt.pop %v630
        %v632 = vmul.f32 %v624, %v631
        %v634 = vlaneseq
        %v635 = vshrl.u32 %v634, 7
        %v636 = vsub.s32 0, %v635
        %v637 = vrot.slane %v616, %v636
        %v639 = vmul.f32 %v632, %v637
        %v641 = vlaneseq
        %v642 = vshrl.u32 %v641, 7
        %v643 = vsub.s32 0, %v642
        %v644 = vrot.slane %v617, %v643
        %v646 = vadd.f32 %v639, %v644
        %v647 = vpack.c.bf16 %v646, %v646
        %v648 = vld [vmem:[#allocation9] sm:$0xf]
        %v649 = vld [vmem:[#allocation9 + $0x4] sm:$0xf]
        %v650 = vld [vmem:[#allocation9 + $0x8] sm:$0xf]
        %v651 = vld [vmem:[#allocation9 + $0xc] sm:$0xf]
        %v652 = vld [vmem:[#allocation11] sm:$0x1]
        %v654 = vlaneseq
        %v655 = vshrl.u32 %v654, 7
        %v656 = vsub.s32 0, %v655
        %v657 = vrot.slane %v652, %v656
        %v663 = vunpack.c.l.b16 %v648
        %v664 = vunpack.c.l.b16 %v649
        %v665 = vunpack.c.l.b16 %v650
        %v666 = vunpack.c.l.b16 %v651
        %v667 = vpack.c.b16 %v664, %v663
        %v668 = vpack.c.b16 %v666, %v665
        %v672 = vsel %vm618, %v647, 0
        %674 = vmatprep.subr.bf16.mxu0 0
        %675 = vmatpush1.bf16.msra.mxu0 %v667
        %676 = vmatprep.subr.bf16.mxu0 0
        %677 = vmatpush1.bf16.msra.mxu0 %v668
        %678 = vmatprep.subr.bf16.mxu0 0
        %679 = vmatpush1.bf16.msra.mxu0 0
        %680 = vmatprep.subr.bf16.mxu0 0
        %681 = vmatpush1.bf16.msra.mxu0 0
        %682 = vmatprep.subr.bf16.mxu0 0
        %683 = vmatpush1.bf16.msra.mxu0 0
        %684 = vmatprep.subr.bf16.mxu0 0
        %685 = vmatpush1.bf16.msra.mxu0 0
        %686 = vmatprep.subr.bf16.mxu0 0
        %687 = vmatpush1.bf16.msra.mxu0 0
        %688 = vmatprep.subr.bf16.mxu0 0
        %689 = vmatpush1.bf16.msra.mxu0 0
        %690 = vmatprep.subr.bf16.mxu0 0
        %691 = vmatpush1.bf16.msra.mxu0 0
        %692 = vmatprep.subr.bf16.mxu0 0
        %693 = vmatpush1.bf16.msra.mxu0 0
        %694 = vmatprep.subr.bf16.mxu0 0
        %695 = vmatpush1.bf16.msra.mxu0 0
        %696 = vmatprep.subr.bf16.mxu0 0
        %697 = vmatpush1.bf16.msra.mxu0 0
        %698 = vmatprep.subr.bf16.mxu0 0
        %699 = vmatpush1.bf16.msra.mxu0 0
        %700 = vmatprep.subr.bf16.mxu0 0
        %701 = vmatpush1.bf16.msra.mxu0 0
        %702 = vmatprep.subr.bf16.mxu0 0
        %703 = vmatpush1.bf16.msra.mxu0 0
        %704 = vmatprep.subr.bf16.mxu0 0
        %705 = vmatpush1.bf16.msra.mxu0 0
        %706 = vmatprep.mubr.bf16.mxu0 0
        %707 = vmatmul.mubr.bf16.gmra.mrb[0].mxu0 %v672
        %v708 = vpop.f32.mrb[0].mxu0
        %v709 = vadd.f32 %v657, %v708
        %v710 = vpop.f32.mrb[0].mxu0
        %v711 = vpop.f32.mrb[0].mxu0
        %v712 = vpop.f32.mrb[0].mxu0
        %713 = vdwg.mxu0
        %v714 = vmul.f32 %v709, 0.35355338
        %v715 = vpack.c.bf16 %v714, %v714
        %v716 = vpack.c.bf16 %v709, %v709
        %718 = vrot.lane.b32.xlu0 %v716, 96
        %v719 = vpop.permute.xlu0 %718
        %vm720 = vcmask 64512
        %v722 = vsel %vm720, %v715, 0
        %v725 = vsel %vm720, %v719, 0
        %727 = vmatprep.subr.bf16.mxu0 0
        %728 = vmatpush1.bf16.xpose.msra.mxu0 %v725
        %729 = vmatprep.subr.bf16.mxu0 0
        %730 = vmatpush1.bf16.xpose.msra.mxu0 0
        %731 = vmatprep.subr.bf16.mxu0 0
        %732 = vmatpush1.bf16.xpose.msra.mxu0 0
        %733 = vmatprep.subr.bf16.mxu0 0
        %734 = vmatpush1.bf16.xpose.msra.mxu0 0
        %735 = vmatprep.subr.bf16.mxu0 0
        %736 = vmatpush1.bf16.xpose.msra.mxu0 0
        %737 = vmatprep.subr.bf16.mxu0 0
        %738 = vmatpush1.bf16.xpose.msra.mxu0 0
        %739 = vmatprep.subr.bf16.mxu0 0
        %740 = vmatpush1.bf16.xpose.msra.mxu0 0
        %741 = vmatprep.subr.bf16.mxu0 0
        %742 = vmatpush1.bf16.xpose.msra.mxu0 0
        %743 = vmatprep.subr.bf16.mxu0 0
        %744 = vmatpush1.bf16.xpose.msra.mxu0 0
        %745 = vmatprep.subr.bf16.mxu0 0
        %746 = vmatpush1.bf16.xpose.msra.mxu0 0
        %747 = vmatprep.subr.bf16.mxu0 0
        %748 = vmatpush1.bf16.xpose.msra.mxu0 0
        %749 = vmatprep.subr.bf16.mxu0 0
        %750 = vmatpush1.bf16.xpose.msra.mxu0 0
        %751 = vmatprep.subr.bf16.mxu0 0
        %752 = vmatpush1.bf16.xpose.msra.mxu0 0
        %753 = vmatprep.subr.bf16.mxu0 0
        %754 = vmatpush1.bf16.xpose.msra.mxu0 0
        %755 = vmatprep.subr.bf16.mxu0 0
        %756 = vmatpush1.bf16.xpose.msra.mxu0 0
        %757 = vmatprep.subr.bf16.mxu0 0
        %758 = vmatpush1.bf16.xpose.msra.mxu0 0
        %759 = vmatprep.mubr.bf16.mxu0 0
        %760 = vmatmul.mubr.bf16.gmra.mrb[0].mxu0 %v722
        %v761 = vpop.f32.mrb[0].mxu0
        %v762 = vadd.f32 0.0, %v761
        %v763 = vpop.f32.mrb[0].mxu0
        %v764 = vpop.f32.mrb[0].mxu0
        %v765 = vpop.f32.mrb[0].mxu0
        %766 = vdwg.mxu0
        %v767 = vsel %vm720, %v762, -inf
        %768 = vmax.xlane.f32.xlu0 %v767
        %v769 = vpop.xlane.xlu0 %768
        %v770 = vsub.f32 %v762, %v769
        %v771 = vmul.f32 %v770, 1.442695
        %v772 = vpow.pop %v771
        %v773 = vsel %vm720, %v772, 0.0
        %774 = vadd.xlane.f32.xlu0 %v773
        %v775 = vpop.xlane.xlu0 %774
        %v776 = vrcp.pop %v775
        %v777 = vmul.f32 %v772, %v776
        %v778 = vpack.c.bf16 %v777, %v777
        %779 = vrot.lane.b32.xlu0 %v716, 64
        %v780 = vpop.permute.xlu0 %779
        %v782 = vsel %vm720, %v778, 0
        %vm784 = vcmask 1043456
        %v786 = vsel %vm784, %v780, 0
        %788 = vmatprep.subr.bf16.mxu0 0
        %789 = vmatpush1.bf16.msra.mxu0 %v786
        %790 = vmatprep.subr.bf16.mxu0 0
        %791 = vmatpush1.bf16.msra.mxu0 0
        %792 = vmatprep.subr.bf16.mxu0 0
        %793 = vmatpush1.bf16.msra.mxu0 0
        %794 = vmatprep.subr.bf16.mxu0 0
        %795 = vmatpush1.bf16.msra.mxu0 0
        %796 = vmatprep.subr.bf16.mxu0 0
        %797 = vmatpush1.bf16.msra.mxu0 0
        %798 = vmatprep.subr.bf16.mxu0 0
        %799 = vmatpush1.bf16.msra.mxu0 0
        %800 = vmatprep.subr.bf16.mxu0 0
        %801 = vmatpush1.bf16.msra.mxu0 0
        %802 = vmatprep.subr.bf16.mxu0 0
        %803 = vmatpush1.bf16.msra.mxu0 0
        %804 = vmatprep.subr.bf16.mxu0 0
        %805 = vmatpush1.bf16.msra.mxu0 0
        %806 = vmatprep.subr.bf16.mxu0 0
        %807 = vmatpush1.bf16.msra.mxu0 0
        %808 = vmatprep.subr.bf16.mxu0 0
        %809 = vmatpush1.bf16.msra.mxu0 0
        %810 = vmatprep.subr.bf16.mxu0 0
        %811 = vmatpush1.bf16.msra.mxu0 0
        %812 = vmatprep.subr.bf16.mxu0 0
        %813 = vmatpush1.bf16.msra.mxu0 0
        %814 = vmatprep.subr.bf16.mxu0 0
        %815 = vmatpush1.bf16.msra.mxu0 0
        %816 = vmatprep.subr.bf16.mxu0 0
        %817 = vmatpush1.bf16.msra.mxu0 0
        %818 = vmatprep.subr.bf16.mxu0 0
        %819 = vmatpush1.bf16.msra.mxu0 0
        %820 = vmatprep.mubr.bf16.mxu0 0
        %821 = vmatmul.mubr.bf16.gmra.mrb[0].mxu0 %v782
        %v822 = vpop.f32.mrb[0].mxu0
        %v823 = vadd.f32 0.0, %v822
        %v824 = vpop.f32.mrb[0].mxu0
        %v825 = vpop.f32.mrb[0].mxu0
        %v826 = vpop.f32.mrb[0].mxu0
        %827 = vdwg.mxu0
        %828 = vst.msk [vmem:[#allocation2] sm:$0xff] %vm720, %v823
        %830 = vrot.lane.b32.xlu0 %v715, 120
        %v831 = vpop.permute.xlu0 %830
        %832 = vrot.lane.b32.xlu0 %v716, 88
        %v833 = vpop.permute.xlu0 %832
        %v835 = vsel %vm720, %v831, 0
        %v838 = vsel %vm720, %v833, 0
        %840 = vmatprep.subr.bf16.mxu0 0
        %841 = vmatpush1.bf16.xpose.msra.mxu0 %v838
        %842 = vmatprep.subr.bf16.mxu0 0
        %843 = vmatpush1.bf16.xpose.msra.mxu0 0
        %844 = vmatprep.subr.bf16.mxu0 0
        %845 = vmatpush1.bf16.xpose.msra.mxu0 0
        %846 = vmatprep.subr.bf16.mxu0 0
        %847 = vmatpush1.bf16.xpose.msra.mxu0 0
        %848 = vmatprep.subr.bf16.mxu0 0
        %849 = vmatpush1.bf16.xpose.msra.mxu0 0
        %850 = vmatprep.subr.bf16.mxu0 0
        %851 = vmatpush1.bf16.xpose.msra.mxu0 0
        %852 = vmatprep.subr.bf16.mxu0 0
        %853 = vmatpush1.bf16.xpose.msra.mxu0 0
        %854 = vmatprep.subr.bf16.mxu0 0
        %855 = vmatpush1.bf16.xpose.msra.mxu0 0
        %856 = vmatprep.subr.bf16.mxu0 0
        %857 = vmatpush1.bf16.xpose.msra.mxu0 0
        %858 = vmatprep.subr.bf16.mxu0 0
        %859 = vmatpush1.bf16.xpose.msra.mxu0 0
        %860 = vmatprep.subr.bf16.mxu0 0
        %861 = vmatpush1.bf16.xpose.msra.mxu0 0
        %862 = vmatprep.subr.bf16.mxu0 0
        %863 = vmatpush1.bf16.xpose.msra.mxu0 0
        %864 = vmatprep.subr.bf16.mxu0 0
        %865 = vmatpush1.bf16.xpose.msra.mxu0 0
        %866 = vmatprep.subr.bf16.mxu0 0
        %867 = vmatpush1.bf16.xpose.msra.mxu0 0
        %868 = vmatprep.subr.bf16.mxu0 0
        %869 = vmatpush1.bf16.xpose.msra.mxu0 0
        %870 = vmatprep.subr.bf16.mxu0 0
        %871 = vmatpush1.bf16.xpose.msra.mxu0 0
        %872 = vmatprep.mubr.bf16.mxu0 0
        %873 = vmatmul.mubr.bf16.gmra.mrb[0].mxu0 %v835
        %v874 = vpop.f32.mrb[0].mxu0
        %v875 = vadd.f32 0.0, %v874
        %v876 = vpop.f32.mrb[0].mxu0
        %v877 = vpop.f32.mrb[0].mxu0
        %v878 = vpop.f32.mrb[0].mxu0
        %879 = vdwg.mxu0
        %v880 = vsel %vm720, %v875, -inf
        %881 = vmax.xlane.f32.xlu0 %v880
        %v882 = vpop.xlane.xlu0 %881
        %v883 = vsub.f32 %v875, %v882
        %v884 = vmul.f32 %v883, 1.442695
        %v885 = vpow.pop %v884
        %v886 = vsel %vm720, %v885, 0.0
        %887 = vadd.xlane.f32.xlu0 %v886
        %v888 = vpop.xlane.xlu0 %887
        %v889 = vrcp.pop %v888
        %v890 = vmul.f32 %v885, %v889
        %v891 = vpack.c.bf16 %v890, %v890
        %892 = vrot.lane.b32.xlu0 %v716, 56
        %v893 = vpop.permute.xlu0 %892
        %v895 = vsel %vm720, %v891, 0
        %v898 = vsel %vm784, %v893, 0
        %900 = vmatprep.subr.bf16.mxu0 0
        %901 = vmatpush1.bf16.msra.mxu0 %v898
        %902 = vmatprep.subr.bf16.mxu0 0
        %903 = vmatpush1.bf16.msra.mxu0 0
        %904 = vmatprep.subr.bf16.mxu0 0
        %905 = vmatpush1.bf16.msra.mxu0 0
        %906 = vmatprep.subr.bf16.mxu0 0
        %907 = vmatpush1.bf16.msra.mxu0 0
        %908 = vmatprep.subr.bf16.mxu0 0
        %909 = vmatpush1.bf16.msra.mxu0 0
        %910 = vmatprep.subr.bf16.mxu0 0
        %911 = vmatpush1.bf16.msra.mxu0 0
        %912 = vmatprep.subr.bf16.mxu0 0
        %913 = vmatpush1.bf16.msra.mxu0 0
        %914 = vmatprep.subr.bf16.mxu0 0
        %915 = vmatpush1.bf16.msra.mxu0 0
        %916 = vmatprep.subr.bf16.mxu0 0
        %917 = vmatpush1.bf16.msra.mxu0 0
        %918 = vmatprep.subr.bf16.mxu0 0
        %919 = vmatpush1.bf16.msra.mxu0 0
        %920 = vmatprep.subr.bf16.mxu0 0
        %921 = vmatpush1.bf16.msra.mxu0 0
        %922 = vmatprep.subr.bf16.mxu0 0
        %923 = vmatpush1.bf16.msra.mxu0 0
        %924 = vmatprep.subr.bf16.mxu0 0
        %925 = vmatpush1.bf16.msra.mxu0 0
        %926 = vmatprep.subr.bf16.mxu0 0
        %927 = vmatpush1.bf16.msra.mxu0 0
        %928 = vmatprep.subr.bf16.mxu0 0
        %929 = vmatpush1.bf16.msra.mxu0 0
        %930 = vmatprep.subr.bf16.mxu0 0
        %931 = vmatpush1.bf16.msra.mxu0 0
        %932 = vmatprep.mubr.bf16.mxu0 0
        %933 = vmatmul.mubr.bf16.gmra.mrb[0].mxu0 %v895
        %v934 = vpop.f32.mrb[0].mxu0
        %v935 = vadd.f32 0.0, %v934
        %v936 = vpop.f32.mrb[0].mxu0
        %v937 = vpop.f32.mrb[0].mxu0
        %v938 = vpop.f32.mrb[0].mxu0
        %939 = vdwg.mxu0
        %941 = vrot.lane.b32.xlu0 %v935, 8
        %v942 = vpop.permute.xlu0 %941
        %vm944 = vcmask 130112
        %945 = vst.msk [vmem:[#allocation2] sm:$0xff] %vm944, %v942
        %946 = vrot.lane.b32.xlu0 %v715, 112
        %v947 = vpop.permute.xlu0 %946
        %948 = vrot.lane.b32.xlu0 %v716, 80
        %v949 = vpop.permute.xlu0 %948
        %v951 = vsel %vm720, %v947, 0
        %v954 = vsel %vm720, %v949, 0
        %956 = vmatprep.subr.bf16.mxu0 0
        %957 = vmatpush1.bf16.xpose.msra.mxu0 %v954
        %958 = vmatprep.subr.bf16.mxu0 0
        %959 = vmatpush1.bf16.xpose.msra.mxu0 0
        %960 = vmatprep.subr.bf16.mxu0 0
        %961 = vmatpush1.bf16.xpose.msra.mxu0 0
        %962 = vmatprep.subr.bf16.mxu0 0
        %963 = vmatpush1.bf16.xpose.msra.mxu0 0
        %964 = vmatprep.subr.bf16.mxu0 0
        %965 = vmatpush1.bf16.xpose.msra.mxu0 0
        %966 = vmatprep.subr.bf16.mxu0 0
        %967 = vmatpush1.bf16.xpose.msra.mxu0 0
        %968 = vmatprep.subr.bf16.mxu0 0
        %969 = vmatpush1.bf16.xpose.msra.mxu0 0
        %970 = vmatprep.subr.bf16.mxu0 0
        %971 = vmatpush1.bf16.xpose.msra.mxu0 0
        %972 = vmatprep.subr.bf16.mxu0 0
        %973 = vmatpush1.bf16.xpose.msra.mxu0 0
        %974 = vmatprep.subr.bf16.mxu0 0
        %975 = vmatpush1.bf16.xpose.msra.mxu0 0
        %976 = vmatprep.subr.bf16.mxu0 0
        %977 = vmatpush1.bf16.xpose.msra.mxu0 0
        %978 = vmatprep.subr.bf16.mxu0 0
        %979 = vmatpush1.bf16.xpose.msra.mxu0 0
        %980 = vmatprep.subr.bf16.mxu0 0
        %981 = vmatpush1.bf16.xpose.msra.mxu0 0
        %982 = vmatprep.subr.bf16.mxu0 0
        %983 = vmatpush1.bf16.xpose.msra.mxu0 0
        %984 = vmatprep.subr.bf16.mxu0 0
        %985 = vmatpush1.bf16.xpose.msra.mxu0 0
        %986 = vmatprep.subr.bf16.mxu0 0
        %987 = vmatpush1.bf16.xpose.msra.mxu0 0
        %988 = vmatprep.mubr.bf16.mxu0 0
        %989 = vmatmul.mubr.bf16.gmra.mrb[0].mxu0 %v951
        %v990 = vpop.f32.mrb[0].mxu0
        %v991 = vadd.f32 0.0, %v990
        %v992 = vpop.f32.mrb[0].mxu0
        %v993 = vpop.f32.mrb[0].mxu0
        %v994 = vpop.f32.mrb[0].mxu0
        %995 = vdwg.mxu0
        %v996 = vsel %vm720, %v991, -inf
        %997 = vmax.xlane.f32.xlu0 %v996
        %v998 = vpop.xlane.xlu0 %997
        %v999 = vsub.f32 %v991, %v998
        %v1000 = vmul.f32 %v999, 1.442695
        %v1001 = vpow.pop %v1000
        %v1002 = vsel %vm720, %v1001, 0.0
        %1003 = vadd.xlane.f32.xlu0 %v1002
        %v1004 = vpop.xlane.xlu0 %1003
        %v1005 = vrcp.pop %v1004
        %v1006 = vmul.f32 %v1001, %v1005
        %v1007 = vpack.c.bf16 %v1006, %v1006
        %1008 = vrot.lane.b32.xlu0 %v716, 48
        %v1009 = vpop.permute.xlu0 %1008
        %v1011 = vsel %vm720, %v1007, 0
        %v1014 = vsel %vm784, %v1009, 0
        %1016 = vmatprep.subr.bf16.mxu0 0
        %1017 = vmatpush1.bf16.msra.mxu0 %v1014
        %1018 = vmatprep.subr.bf16.mxu0 0
        %1019 = vmatpush1.bf16.msra.mxu0 0
        %1020 = vmatprep.subr.bf16.mxu0 0
        %1021 = vmatpush1.bf16.msra.mxu0 0
        %1022 = vmatprep.subr.bf16.mxu0 0
        %1023 = vmatpush1.bf16.msra.mxu0 0
        %1024 = vmatprep.subr.bf16.mxu0 0
        %1025 = vmatpush1.bf16.msra.mxu0 0
        %1026 = vmatprep.subr.bf16.mxu0 0
        %1027 = vmatpush1.bf16.msra.mxu0 0
        %1028 = vmatprep.subr.bf16.mxu0 0
        %1029 = vmatpush1.bf16.msra.mxu0 0
        %1030 = vmatprep.subr.bf16.mxu0 0
        %1031 = vmatpush1.bf16.msra.mxu0 0
        %1032 = vmatprep.subr.bf16.mxu0 0
        %1033 = vmatpush1.bf16.msra.mxu0 0
        %1034 = vmatprep.subr.bf16.mxu0 0
        %1035 = vmatpush1.bf16.msra.mxu0 0
        %1036 = vmatprep.subr.bf16.mxu0 0
        %1037 = vmatpush1.bf16.msra.mxu0 0
        %1038 = vmatprep.subr.bf16.mxu0 0
        %1039 = vmatpush1.bf16.msra.mxu0 0
        %1040 = vmatprep.subr.bf16.mxu0 0
        %1041 = vmatpush1.bf16.msra.mxu0 0
        %1042 = vmatprep.subr.bf16.mxu0 0
        %1043 = vmatpush1.bf16.msra.mxu0 0
        %1044 = vmatprep.subr.bf16.mxu0 0
        %1045 = vmatpush1.bf16.msra.mxu0 0
        %1046 = vmatprep.subr.bf16.mxu0 0
        %1047 = vmatpush1.bf16.msra.mxu0 0
        %1048 = vmatprep.mubr.bf16.mxu0 0
        %1049 = vmatmul.mubr.bf16.gmra.mrb[0].mxu0 %v1011
        %v1050 = vpop.f32.mrb[0].mxu0
        %v1051 = vadd.f32 0.0, %v1050
        %v1052 = vpop.f32.mrb[0].mxu0
        %v1053 = vpop.f32.mrb[0].mxu0
        %v1054 = vpop.f32.mrb[0].mxu0
        %1055 = vdwg.mxu0
        %1057 = vrot.lane.b32.xlu0 %v1051, 16
        %v1058 = vpop.permute.xlu0 %1057
        %vm1060 = vcmask 195712
        %1061 = vst.msk [vmem:[#allocation2] sm:$0xff] %vm1060, %v1058
        %1062 = vrot.lane.b32.xlu0 %v715, 104
        %v1063 = vpop.permute.xlu0 %1062
        %1064 = vrot.lane.b32.xlu0 %v716, 72
        %v1065 = vpop.permute.xlu0 %1064
        %v1067 = vsel %vm720, %v1063, 0
        %v1070 = vsel %vm720, %v1065, 0
        %1072 = vmatprep.subr.bf16.mxu0 0
        %1073 = vmatpush1.bf16.xpose.msra.mxu0 %v1070
        %1074 = vmatprep.subr.bf16.mxu0 0
        %1075 = vmatpush1.bf16.xpose.msra.mxu0 0
        %1076 = vmatprep.subr.bf16.mxu0 0
        %1077 = vmatpush1.bf16.xpose.msra.mxu0 0
        %1078 = vmatprep.subr.bf16.mxu0 0
        %1079 = vmatpush1.bf16.xpose.msra.mxu0 0
        %1080 = vmatprep.subr.bf16.mxu0 0
        %1081 = vmatpush1.bf16.xpose.msra.mxu0 0
        %1082 = vmatprep.subr.bf16.mxu0 0
        %1083 = vmatpush1.bf16.xpose.msra.mxu0 0
        %1084 = vmatprep.subr.bf16.mxu0 0
        %1085 = vmatpush1.bf16.xpose.msra.mxu0 0
        %1086 = vmatprep.subr.bf16.mxu0 0
        %1087 = vmatpush1.bf16.xpose.msra.mxu0 0
        %1088 = vmatprep.subr.bf16.mxu0 0
        %1089 = vmatpush1.bf16.xpose.msra.mxu0 0
        %1090 = vmatprep.subr.bf16.mxu0 0
        %1091 = vmatpush1.bf16.xpose.msra.mxu0 0
        %1092 = vmatprep.subr.bf16.mxu0 0
        %1093 = vmatpush1.bf16.xpose.msra.mxu0 0
        %1094 = vmatprep.subr.bf16.mxu0 0
        %1095 = vmatpush1.bf16.xpose.msra.mxu0 0
        %1096 = vmatprep.subr.bf16.mxu0 0
        %1097 = vmatpush1.bf16.xpose.msra.mxu0 0
        %1098 = vmatprep.subr.bf16.mxu0 0
        %1099 = vmatpush1.bf16.xpose.msra.mxu0 0
        %1100 = vmatprep.subr.bf16.mxu0 0
        %1101 = vmatpush1.bf16.xpose.msra.mxu0 0
        %1102 = vmatprep.subr.bf16.mxu0 0
        %1103 = vmatpush1.bf16.xpose.msra.mxu0 0
        %1104 = vmatprep.mubr.bf16.mxu0 0
        %1105 = vmatmul.mubr.bf16.gmra.mrb[0].mxu0 %v1067
        %v1106 = vpop.f32.mrb[0].mxu0
        %v1107 = vadd.f32 0.0, %v1106
        %v1108 = vpop.f32.mrb[0].mxu0
        %v1109 = vpop.f32.mrb[0].mxu0
        %v1110 = vpop.f32.mrb[0].mxu0
        %1111 = vdwg.mxu0
        %v1112 = vsel %vm720, %v1107, -inf
        %1113 = vmax.xlane.f32.xlu0 %v1112
        %v1114 = vpop.xlane.xlu0 %1113
        %v1115 = vsub.f32 %v1107, %v1114
        %v1116 = vmul.f32 %v1115, 1.442695
        %v1117 = vpow.pop %v1116
        %v1118 = vsel %vm720, %v1117, 0.0
        %1119 = vadd.xlane.f32.xlu0 %v1118
        %v1120 = vpop.xlane.xlu0 %1119
        %v1121 = vrcp.pop %v1120
        %v1122 = vmul.f32 %v1117, %v1121
        %v1123 = vpack.c.bf16 %v1122, %v1122
        %1124 = vrot.lane.b32.xlu0 %v716, 40
        %v1125 = vpop.permute.xlu0 %1124
        %v1127 = vsel %vm720, %v1123, 0
        %v1130 = vsel %vm784, %v1125, 0
        %1132 = vmatprep.subr.bf16.mxu0 0
        %1133 = vmatpush1.bf16.msra.mxu0 %v1130
        %1134 = vmatprep.subr.bf16.mxu0 0
        %1135 = vmatpush1.bf16.msra.mxu0 0
        %1136 = vmatprep.subr.bf16.mxu0 0
        %1137 = vmatpush1.bf16.msra.mxu0 0
        %1138 = vmatprep.subr.bf16.mxu0 0
        %1139 = vmatpush1.bf16.msra.mxu0 0
        %1140 = vmatprep.subr.bf16.mxu0 0
        %1141 = vmatpush1.bf16.msra.mxu0 0
        %1142 = vmatprep.subr.bf16.mxu0 0
        %1143 = vmatpush1.bf16.msra.mxu0 0
        %1144 = vmatprep.subr.bf16.mxu0 0
        %1145 = vmatpush1.bf16.msra.mxu0 0
        %1146 = vmatprep.subr.bf16.mxu0 0
        %1147 = vmatpush1.bf16.msra.mxu0 0
        %1148 = vmatprep.subr.bf16.mxu0 0
        %1149 = vmatpush1.bf16.msra.mxu0 0
        %1150 = vmatprep.subr.bf16.mxu0 0
        %1151 = vmatpush1.bf16.msra.mxu0 0
        %1152 = vmatprep.subr.bf16.mxu0 0
        %1153 = vmatpush1.bf16.msra.mxu0 0
        %1154 = vmatprep.subr.bf16.mxu0 0
        %1155 = vmatpush1.bf16.msra.mxu0 0
        %1156 = vmatprep.subr.bf16.mxu0 0
        %1157 = vmatpush1.bf16.msra.mxu0 0
        %1158 = vmatprep.subr.bf16.mxu0 0
        %1159 = vmatpush1.bf16.msra.mxu0 0
        %1160 = vmatprep.subr.bf16.mxu0 0
        %1161 = vmatpush1.bf16.msra.mxu0 0
        %1162 = vmatprep.subr.bf16.mxu0 0
        %1163 = vmatpush1.bf16.msra.mxu0 0
        %1164 = vmatprep.mubr.bf16.mxu0 0
        %1165 = vmatmul.mubr.bf16.gmra.mrb[0].mxu0 %v1127
        %v1166 = vpop.f32.mrb[0].mxu0
        %v1167 = vadd.f32 0.0, %v1166
        %v1168 = vpop.f32.mrb[0].mxu0
        %v1169 = vpop.f32.mrb[0].mxu0
        %v1170 = vpop.f32.mrb[0].mxu0
        %1171 = vdwg.mxu0
        %1173 = vrot.lane.b32.xlu0 %v1167, 24
        %v1174 = vpop.permute.xlu0 %1173
        %vm1176 = vcmask 261312
        %1177 = vst.msk [vmem:[#allocation2] sm:$0xff] %vm1176, %v1174
        %v1178 = vld [vmem:[#allocation2] sm:$0xff]
        %v1179 = vpack.c.bf16 %v1178, %v1178
        %v1180 = vld [vmem:[#allocation12] sm:$0xf]
        %v1181 = vld [vmem:[#allocation12 + $0x4] sm:$0xf]
        %v1182 = vld [vmem:[#allocation12 + $0x8] sm:$0xf]
        %v1183 = vld [vmem:[#allocation12 + $0xc] sm:$0xf]
        %v1184 = vld [vmem:[#allocation14] sm:$0x1]
        %v1186 = vlaneseq
        %v1187 = vshrl.u32 %v1186, 7
        %v1188 = vsub.s32 0, %v1187
        %v1189 = vrot.slane %v1184, %v1188
        %v1195 = vunpack.c.l.b16 %v1180
        %v1196 = vunpack.c.l.b16 %v1181
        %v1197 = vunpack.c.l.b16 %v1182
        %v1198 = vunpack.c.l.b16 %v1183
        %v1199 = vpack.c.b16 %v1196, %v1195
        %v1200 = vpack.c.b16 %v1198, %v1197
        %v1204 = vsel %vm618, %v1179, 0
        %1206 = vmatprep.subr.bf16.mxu0 0
        %1207 = vmatpush1.bf16.msra.mxu0 %v1199
        %1208 = vmatprep.subr.bf16.mxu0 0
        %1209 = vmatpush1.bf16.msra.mxu0 %v1200
        %1210 = vmatprep.subr.bf16.mxu0 0
        %1211 = vmatpush1.bf16.msra.mxu0 0
        %1212 = vmatprep.subr.bf16.mxu0 0
        %1213 = vmatpush1.bf16.msra.mxu0 0
        %1214 = vmatprep.subr.bf16.mxu0 0
        %1215 = vmatpush1.bf16.msra.mxu0 0
        %1216 = vmatprep.subr.bf16.mxu0 0
        %1217 = vmatpush1.bf16.msra.mxu0 0
        %1218 = vmatprep.subr.bf16.mxu0 0
        %1219 = vmatpush1.bf16.msra.mxu0 0
        %1220 = vmatprep.subr.bf16.mxu0 0
        %1221 = vmatpush1.bf16.msra.mxu0 0
        %1222 = vmatprep.subr.bf16.mxu0 0
        %1223 = vmatpush1.bf16.msra.mxu0 0
        %1224 = vmatprep.subr.bf16.mxu0 0
        %1225 = vmatpush1.bf16.msra.mxu0 0
        %1226 = vmatprep.subr.bf16.mxu0 0
        %1227 = vmatpush1.bf16.msra.mxu0 0
        %1228 = vmatprep.subr.bf16.mxu0 0
        %1229 = vmatpush1.bf16.msra.mxu0 0
        %1230 = vmatprep.subr.bf16.mxu0 0
        %1231 = vmatpush1.bf16.msra.mxu0 0
        %1232 = vmatprep.subr.bf16.mxu0 0
        %1233 = vmatpush1.bf16.msra.mxu0 0
        %1234 = vmatprep.subr.bf16.mxu0 0
        %1235 = vmatpush1.bf16.msra.mxu0 0
        %1236 = vmatprep.subr.bf16.mxu0 0
        %1237 = vmatpush1.bf16.msra.mxu0 0
        %1238 = vmatprep.mubr.bf16.mxu0 0
        %1239 = vmatmul.mubr.bf16.gmra.mrb[0].mxu0 %v1204
        %v1240 = vpop.f32.mrb[0].mxu0
        %v1241 = vadd.f32 %v1189, %v1240
        %v1242 = vpop.f32.mrb[0].mxu0
        %v1243 = vpop.f32.mrb[0].mxu0
        %v1244 = vpop.f32.mrb[0].mxu0
        %1245 = vdwg.mxu0
        %v1246 = vadd.f32 %v615, %v1241
        %v1247 = vld [vmem:[#allocation15] sm:$0x1]
        %v1248 = vld [vmem:[#allocation17] sm:$0x1]
        %v1249 = vsel %vm618, %v1246, 0.0
        %1250 = vadd.xlane.f32.xlu0 %v1249
        %v1251 = vpop.xlane.xlu0 %1250
        %v1252 = vmul.f32 %v1251, %v622
        %v1253 = vsub.f32 %v1246, %v1252
        %v1254 = vmul.f32 %v1253, %v1253
        %v1255 = vsel %vm618, %v1254, 0.0
        %1256 = vadd.xlane.f32.xlu0 %v1255
        %v1257 = vpop.xlane.xlu0 %1256
        %v1258 = vmul.f32 %v1257, %v622
        %v1259 = vadd.f32 %v1258, 1e-05
        %v1260 = vrsqrt.pop %v1259
        %v1261 = vmul.f32 %v1253, %v1260
        %v1263 = vlaneseq
        %v1264 = vshrl.u32 %v1263, 7
        %v1265 = vsub.s32 0, %v1264
        %v1266 = vrot.slane %v1247, %v1265
        %v1268 = vmul.f32 %v1261, %v1266
        %v1270 = vlaneseq
        %v1271 = vshrl.u32 %v1270, 7
        %v1272 = vsub.s32 0, %v1271
        %v1273 = vrot.slane %v1248, %v1272
        %v1275 = vadd.f32 %v1268, %v1273
        %v1276 = vpack.c.bf16 %v1275, %v1275
        %v1277 = vld [vmem:[#allocation18] sm:$0xf]
        %v1278 = vld [vmem:[#allocation18 + $0x4] sm:$0xf]
        %v1279 = vld [vmem:[#allocation18 + $0x8] sm:$0xf]
        %v1280 = vld [vmem:[#allocation18 + $0xc] sm:$0xf]
        %v1281 = vld [vmem:[#allocation20] sm:$0x1]
        %v1283 = vlaneseq
        %v1284 = vshrl.u32 %v1283, 7
        %v1285 = vsub.s32 0, %v1284
        %v1286 = vrot.slane %v1281, %v1285
        %v1292 = vunpack.c.l.b16 %v1277
        %v1293 = vunpack.c.l.b16 %v1278
        %v1294 = vunpack.c.l.b16 %v1279
        %v1295 = vunpack.c.l.b16 %v1280
        %v1296 = vpack.c.b16 %v1293, %v1292
        %v1297 = vpack.c.b16 %v1295, %v1294
        %v1301 = vsel %vm618, %v1276, 0
        %1303 = vmatprep.subr.bf16.mxu0 0
        %1304 = vmatpush1.bf16.msra.mxu0 %v1296
        %1305 = vmatprep.subr.bf16.mxu0 0
        %1306 = vmatpush1.bf16.msra.mxu0 %v1297
        %1307 = vmatprep.subr.bf16.mxu0 0
        %1308 = vmatpush1.bf16.msra.mxu0 0
        %1309 = vmatprep.subr.bf16.mxu0 0
        %1310 = vmatpush1.bf16.msra.mxu0 0
        %1311 = vmatprep.subr.bf16.mxu0 0
        %1312 = vmatpush1.bf16.msra.mxu0 0
        %1313 = vmatprep.subr.bf16.mxu0 0
        %1314 = vmatpush1.bf16.msra.mxu0 0
        %1315 = vmatprep.subr.bf16.mxu0 0
        %1316 = vmatpush1.bf16.msra.mxu0 0
        %1317 = vmatprep.subr.bf16.mxu0 0
        %1318 = vmatpush1.bf16.msra.mxu0 0
        %1319 = vmatprep.subr.bf16.mxu0 0
        %1320 = vmatpush1.bf16.msra.mxu0 0
        %1321 = vmatprep.subr.bf16.mxu0 0
        %1322 = vmatpush1.bf16.msra.mxu0 0
        %1323 = vmatprep.subr.bf16.mxu0 0
        %1324 = vmatpush1.bf16.msra.mxu0 0
        %1325 = vmatprep.subr.bf16.mxu0 0
        %1326 = vmatpush1.bf16.msra.mxu0 0
        %1327 = vmatprep.subr.bf16.mxu0 0
        %1328 = vmatpush1.bf16.msra.mxu0 0
        %1329 = vmatprep.subr.bf16.mxu0 0
        %1330 = vmatpush1.bf16.msra.mxu0 0
        %1331 = vmatprep.subr.bf16.mxu0 0
        %1332 = vmatpush1.bf16.msra.mxu0 0
        %1333 = vmatprep.subr.bf16.mxu0 0
        %1334 = vmatpush1.bf16.msra.mxu0 0
        %1335 = vmatprep.mubr.bf16.mxu0 0
        %1336 = vmatmul.mubr.bf16.gmra.mrb[0].mxu0 %v1301
        %v1337 = vpop.f32.mrb[0].mxu0
        %v1338 = vadd.f32 %v1286, %v1337
        %v1339 = vpop.f32.mrb[0].mxu0
        %v1340 = vpop.f32.mrb[0].mxu0
        %v1341 = vpop.f32.mrb[0].mxu0
        %1342 = vdwg.mxu0
        %v1343 = vmul.f32 %v1338, 1.702
        %v1344 = vxor.u32 %v1343, 2147483648
        %v1345 = vmul.f32 %v1344, 1.442695
        %v1346 = vpow.pop %v1345
        %v1347 = vadd.f32 %v1346, 1.0
        %v1348 = vrcp.pop %v1347
        %v1349 = vmul.f32 1.0, %v1348
        %v1350 = vmul.f32 %v1338, %v1349
        %v1351 = vpack.c.bf16 %v1350, %v1350
        %v1352 = vld [vmem:[#allocation21] sm:$0xf]
        %v1353 = vld [vmem:[#allocation21 + $0x4] sm:$0xf]
        %v1354 = vld [vmem:[#allocation21 + $0x8] sm:$0xf]
        %v1355 = vld [vmem:[#allocation21 + $0xc] sm:$0xf]
        %v1356 = vld [vmem:[#allocation21 + $0x10] sm:$0xf]
        %v1357 = vld [vmem:[#allocation21 + $0x14] sm:$0xf]
        %v1358 = vld [vmem:[#allocation21 + $0x18] sm:$0xf]
        %v1359 = vld [vmem:[#allocation21 + $0x1c] sm:$0xf]
        %v1360 = vld [vmem:[#allocation21 + $0x20] sm:$0xf]
        %v1361 = vld [vmem:[#allocation21 + $0x24] sm:$0xf]
        %v1362 = vld [vmem:[#allocation21 + $0x28] sm:$0xf]
        %v1363 = vld [vmem:[#allocation21 + $0x2c] sm:$0xf]
        %v1364 = vld [vmem:[#allocation21 + $0x30] sm:$0xf]
        %v1365 = vld [vmem:[#allocation21 + $0x34] sm:$0xf]
        %v1366 = vld [vmem:[#allocation21 + $0x38] sm:$0xf]
        %v1367 = vld [vmem:[#allocation21 + $0x3c] sm:$0xf]
        %v1368 = vld [vmem:[#allocation23] sm:$0x1]
        %v1370 = vlaneseq
        %v1371 = vshrl.u32 %v1370, 7
        %v1372 = vsub.s32 0, %v1371
        %v1373 = vrot.slane %v1368, %v1372
        %v1391 = vunpack.c.l.b16 %v1352
        %v1392 = vunpack.c.l.b16 %v1353
        %v1393 = vunpack.c.l.b16 %v1354
        %v1394 = vunpack.c.l.b16 %v1355
        %v1395 = vunpack.c.l.b16 %v1356
        %v1396 = vunpack.c.l.b16 %v1357
        %v1397 = vunpack.c.l.b16 %v1358
        %v1398 = vunpack.c.l.b16 %v1359
        %v1399 = vunpack.c.l.b16 %v1360
        %v1400 = vunpack.c.l.b16 %v1361
        %v1401 = vunpack.c.l.b16 %v1362
        %v1402 = vunpack.c.l.b16 %v1363
        %v1403 = vunpack.c.l.b16 %v1364
        %v1404 = vunpack.c.l.b16 %v1365
        %v1405 = vunpack.c.l.b16 %v1366
        %v1406 = vunpack.c.l.b16 %v1367
        %v1407 = vpack.c.b16 %v1392, %v1391
        %v1408 = vpack.c.b16 %v1394, %v1393
        %v1409 = vpack.c.b16 %v1396, %v1395
        %v1410 = vpack.c.b16 %v1398, %v1397
        %v1411 = vpack.c.b16 %v1400, %v1399
        %v1412 = vpack.c.b16 %v1402, %v1401
        %v1413 = vpack.c.b16 %v1404, %v1403
        %v1414 = vpack.c.b16 %v1406, %v1405
        %1423 = vmatprep.subr.bf16.mxu0 0
        %1424 = vmatpush1.bf16.msra.mxu0 %v1407
        %1425 = vmatprep.subr.bf16.mxu0 0
        %1426 = vmatpush1.bf16.msra.mxu0 %v1408
        %1427 = vmatprep.subr.bf16.mxu0 0
        %1428 = vmatpush1.bf16.msra.mxu0 %v1409
        %1429 = vmatprep.subr.bf16.mxu0 0
        %1430 = vmatpush1.bf16.msra.mxu0 %v1410
        %1431 = vmatprep.subr.bf16.mxu0 0
        %1432 = vmatpush1.bf16.msra.mxu0 %v1411
        %1433 = vmatprep.subr.bf16.mxu0 0
        %1434 = vmatpush1.bf16.msra.mxu0 %v1412
        %1435 = vmatprep.subr.bf16.mxu0 0
        %1436 = vmatpush1.bf16.msra.mxu0 %v1413
        %1437 = vmatprep.subr.bf16.mxu0 0
        %1438 = vmatpush1.bf16.msra.mxu0 %v1414
        %1439 = vmatprep.subr.bf16.mxu0 0
        %1440 = vmatpush1.bf16.msra.mxu0 0
        %1441 = vmatprep.subr.bf16.mxu0 0
        %1442 = vmatpush1.bf16.msra.mxu0 0
        %1443 = vmatprep.subr.bf16.mxu0 0
        %1444 = vmatpush1.bf16.msra.mxu0 0
        %1445 = vmatprep.subr.bf16.mxu0 0
        %1446 = vmatpush1.bf16.msra.mxu0 0
        %1447 = vmatprep.subr.bf16.mxu0 0
        %1448 = vmatpush1.bf16.msra.mxu0 0
        %1449 = vmatprep.subr.bf16.mxu0 0
        %1450 = vmatpush1.bf16.msra.mxu0 0
        %1451 = vmatprep.subr.bf16.mxu0 0
        %1452 = vmatpush1.bf16.msra.mxu0 0
        %1453 = vmatprep.subr.bf16.mxu0 0
        %1454 = vmatpush1.bf16.msra.mxu0 0
        %1455 = vmatprep.mubr.bf16.mxu0 0
        %1456 = vmatmul.mubr.bf16.gmra.mrb[0].mxu0 %v1351
        %v1457 = vpop.f32.mrb[0].mxu0
        %v1458 = vadd.f32 %v1373, %v1457
        %v1459 = vpop.f32.mrb[0].mxu0
        %v1460 = vpop.f32.mrb[0].mxu0
        %v1461 = vpop.f32.mrb[0].mxu0
        %1462 = vdwg.mxu0
        %v1463 = vadd.f32 %v1246, %v1458
        %1464 = vst.msk [vmem:[%s613] sm:$0xff] %vm618, %v1463
        %s1465 = sand.u32 %s322, 1
        %s1466 = scalar_lea.sflag [#allocation5], %s1465
        %s1467 = sand.u32 %s322, 1
        %s1468 = smul.addr %s1467, 8
        %s1469 = scalar_lea.vmem [#allocation24], %s1468
        // Predicated region
        $region125: #{tpu_custom_call.1} parent=71 // pred_check
          %p1470 = pneg %p332
        $region126: #{tpu_custom_call.1} parent=71 // pred_check_branch
          %1472 = sbr.rel (%p1470) target = $region128
        $region127: #{tpu_custom_call.1} parent=71 // pred_region
          %s1474 = ssub.s32 128, 128
          %1475 = vsyncadd %s1466, %s1474
          %s1476 = smul.addr %s36, 128
          %s1477 = scalar_lea.hbm %s13, %s1476
          %s1479 = sshll.u32 %s1469, 4
          %s1480 = int_to_ptr.vmem [resolvable:$true] %s1479
          %1482 = dma.vmem_to_hbm [thread:$0]  %s1480, 128, %s1477, %s1466
        $region128: #{tpu_custom_call.1} parent=71 // pred_fallthru
          _
      $region72: #{tpu_custom_call.1} parent=5 // pred_fallthru
        _
      %p1483 = scmp.le.s32.totalorder 2, %s31
      // Predicated region
      $region129: #{tpu_custom_call.1} parent=5 // pred_check
        %p1484 = pneg %p1483
      $region130: #{tpu_custom_call.1} parent=5 // pred_check_branch
        %1486 = sbr.rel (%p1484) target = $region132
      $region131: #{tpu_custom_call.1} parent=5 // pred_region
        %s1487 = ssub.s32 %s31, 2
        // Predicated region
        $region133: #{tpu_custom_call.1} parent=131 // pred_check
          %p1488 = pneg %p338
        $region134: #{tpu_custom_call.1} parent=131 // pred_check_branch
          %1490 = sbr.rel (%p1488) target = $region136
        $region135: #{tpu_custom_call.1} parent=131 // pred_region
          %s1491 = sand.u32 %s323, 1
          %s1492 = scalar_lea.sflag [#allocation5], %s1491
          %s1493 = sand.u32 %s323, 1
          %s1494 = smul.addr %s1493, 8
          %s1495 = scalar_lea.vmem [#allocation24], %s1494
          %1496 = dma.done %s1492, 128
        $region136: #{tpu_custom_call.1} parent=131 // pred_fallthru
          _
      $region132: #{tpu_custom_call.1} parent=5 // pred_fallthru
        _
    $region6: #{tpu_custom_call.1} parent=1 // loop_footer
      %s35 = sadd.s32 1, %s31
    $region7: #{tpu_custom_call.1} parent=1 // loop_footer_branch
      %30 = sbr.rel target = $region3
    $region8: #{tpu_custom_call.1} parent=1 // loop_exit
      _
    %1497 = vsyncpa [#allocation4], 1
    %s1498 = scalar_lea.sflag [#allocation4], 1
    %1499 = vsyncpa %s1498, 1
    %1500 = vsyncpa [#allocation7], 1
    %1501 = vsyncpa [#allocation10], 1
    %1502 = vsyncpa [#allocation13], 1
    %1503 = vsyncpa [#allocation16], 1
    %1504 = vsyncpa [#allocation19], 1
    %1505 = vsyncpa [#allocation22], 1
    %1506 = vsyncpa [#allocation5], 1
    %s1507 = scalar_lea.sflag [#allocation5], 1
    %1508 = vsyncpa %s1507, 1

</llo_original>
